<compile_context>
chip_gen: v7x
topology: tpu7x:2x2x1
jax: 0.10.0
libtpu: 0.0.40
codegen_flags: <defaults>
</compile_context>

<pallas_src>
import math

import jax
import jax.numpy as jnp
from jax import lax
from jax.experimental import pallas as pl
from jax.experimental.pallas import tpu as pltpu

_ALPHA = 0.05
_LANES = 128
_CHUNK_ROWS = 512          # rows per in-kernel accumulate chunk (512*128*4B = 256 KiB)


def _round_up(x: int, m: int) -> int:
    return -(-x // m) * m


def _max_block_rows() -> int:
    """Generation-specific streaming block height (rows of 128 lanes)."""
    try:
        kind = jax.devices()[0].device_kind.lower()
    except Exception:   # defensive: never fail block selection
        kind = ""
    if "v6" in kind or "v7" in kind:
        # 4 MiB/input/step; 2 inputs x 2 pipeline buffers = 16 MiB, under the
        # 32 MiB scoped-VMEM default on both v6e and v7x (64 MiB physical on v7x).
        return 8192
    if "v5" in kind:
        # v5 scoped-VMEM default is 16 MiB; 4096 rows -> 8 MiB double-buffered.
        return 4096
    return 2048  # conservative fallback (older / unknown chips)


def _make_loss_kernel(block_rows, chunk_rows, k_steps, nb, rows_in_last,
                      needs_row_mask, has_dup):
    n_chunks = block_rows // chunk_rows

    def _accum_block(o_ref, t_ref, out_ref, valid_rows):
        # valid_rows is a *static* Python int: chunks wholly past it are skipped
        # at trace time; only the single boundary chunk pays for the mask.
        for c in range(n_chunks):
            base = c * chunk_rows
            if base >= valid_rows:
                break
            o = o_ref[base:base + chunk_rows, :].astype(jnp.float32)
            t = t_ref[base:base + chunk_rows, :].astype(jnp.float32)
            d = t - o
            val = d * d * (jnp.tanh(t) + _ALPHA)
            if base + chunk_rows > valid_rows:
                local = base + lax.broadcasted_iota(jnp.int32, val.shape, 0)
                val = jnp.where(local < valid_rows, val, 0.0)
            # (chunk, 128) -> (chunk//8, 8, 128); reduce the leading axis only:
            # pure VALU vreg adds, no per-step cross-lane XLU work.
            out_ref[...] += val.reshape(-1, 8, _LANES).sum(axis=0)

    def kernel(o_ref, t_ref, out_ref):
        p = pl.program_id(0)
        k = pl.program_id(1)
        block_idx = p * k_steps + k

        @pl.when(k == 0)
        def _():
            out_ref[...] = jnp.zeros_like(out_ref)

        if not needs_row_mask and not has_dup:
            _accum_block(o_ref, t_ref, out_ref, block_rows)
        else:
            full_bound = nb - 1 if needs_row_mask else nb
            if full_bound > 0:
                @pl.when(block_idx < full_bound)
                def _():
                    _accum_block(o_ref, t_ref, out_ref, block_rows)

            if needs_row_mask:
                @pl.when(block_idx == nb - 1)
                def _():
                    _accum_block(o_ref, t_ref, out_ref, rows_in_last)
            # block_idx >= nb (clamped duplicate step when nb is odd and the row
            # range is split across two TensorCores): no branch fires, so the
            # step contributes nothing.

    return kernel


def custom_mse(outputs, targets):
    """Pallas equivalent of CustomMSE().forward(outputs, targets)."""
    assert outputs.shape == targets.shape
    assert outputs.dtype == targets.dtype
    total_n = math.prod(int(s) for s in outputs.shape)

    o_flat = outputs.reshape(-1)   # contiguous reshape: no copy
    t_flat = targets.reshape(-1)

    rows = total_n // _LANES       # lane-aligned prefix handled by the kernel
    tail = total_n - rows * _LANES

    if rows < 8:
        # Tiny input: a kernel buys nothing; compute directly in the wrapper.
        o32 = o_flat.astype(jnp.float32)
        t32 = t_flat.astype(jnp.float32)
        d = t32 - o32
        return jnp.sum(d * d * (jnp.tanh(t32) + _ALPHA)) / jnp.float32(total_n)

    # --- block / grid geometry ------------------------------------------------
    max_block_rows = _max_block_rows()
    if rows >= max_block_rows:
        block_rows = max_block_rows
    else:
        block_rows = _round_up(rows, 8)
    chunk_rows = min(_CHUNK_ROWS, block_rows)
    block_rows = _round_up(block_rows, chunk_rows)

    nb = -(-rows // block_rows)                 # number of row blocks
    p_split = 2 if nb >= 2 else 1               # always split when possible:
    k_steps = -(-nb // p_split)                 #   shards across both TCs on v7x,
    has_dup = p_split * k_steps > nb            #   same step count on 1-TC chips
    needs_row_mask = (rows % block_rows) != 0
    rows_in_last = rows - (nb - 1) * block_rows

    if tail:
        # Kernel streams the lane-aligned prefix; the <128-element tail is
        # folded in below with plain jnp (no whole-array jnp.pad round-trip).
        o2d = lax.slice(o_flat, (0,), (rows * _LANES,)).reshape(rows, _LANES)
        t2d = lax.slice(t_flat, (0,), (rows * _LANES,)).reshape(rows, _LANES)
    else:
        o2d = o_flat.reshape(rows, _LANES)
        t2d = t_flat.reshape(rows, _LANES)

    def in_index_map(p, k):
        # Clamp so the duplicate step's DMA (odd nb with a 2-way core split)
        # never reads out-of-bounds HBM; its contribution is dropped in-kernel.
        return (jnp.minimum(p * k_steps + k, nb - 1), 0)

    itemsize = jnp.dtype(outputs.dtype).itemsize
    n_elems = rows * _LANES
    cost = pl.CostEstimate(
        flops=6 * n_elems,
        transcendentals=n_elems,
        bytes_accessed=2 * n_elems * itemsize + p_split * 8 * _LANES * 4,
    )

    partials = pl.pallas_call(
        _make_loss_kernel(block_rows, chunk_rows, k_steps, nb, rows_in_last,
                          needs_row_mask, has_dup),
        out_shape=jax.ShapeDtypeStruct((p_split * 8, _LANES), jnp.float32),
        grid_spec=pltpu.PrefetchScalarGridSpec(
            num_scalar_prefetch=0,
            grid=(p_split, k_steps),
            in_specs=[
                pl.BlockSpec((block_rows, _LANES), in_index_map),
                pl.BlockSpec((block_rows, _LANES), in_index_map),
            ],
            # Output block depends only on p -> resident accumulator across k.
            out_specs=pl.BlockSpec((8, _LANES), lambda p, k: (p, 0)),
        ),
        compiler_params=pltpu.CompilerParams(
            dimension_semantics=("parallel", "arbitrary"),
        ),
        cost_estimate=cost,
    )(o2d, t2d)

    total_sum = jnp.sum(partials)

    if tail:
        o_t = o_flat[rows * _LANES:].astype(jnp.float32)
        t_t = t_flat[rows * _LANES:].astype(jnp.float32)
        d_t = t_t - o_t
        total_sum = total_sum + jnp.sum(d_t * d_t * (jnp.tanh(t_t) + _ALPHA))

    return total_sum / jnp.float32(total_n)


def _reference(outputs, targets):
    t = targets.astype(jnp.float32)
    o = outputs.astype(jnp.float32)
    d = t - o
    return jnp.mean(d * d * (jnp.tanh(t) + _ALPHA))


if __name__ == "__main__":
    key = jax.random.PRNGKey(0)
    k1, k2, k3, k4 = jax.random.split(key, 4)

    # TODO(synk): the dead-code branch of the module (reshape to
    # (-1,75,8,256,256), argmax "angle", sin/weight prints, intermediate
    # per-(batch,angle) loss) never reaches the returned value and is not
    # reproduced.

    # 1) Lane-aligned shape (scaled-down stand-in for the implied
    #    B*75*8*256*256 inputs; the live computation is elementwise + mean).
    shape_a = (2, 8, 256, 256)
    o_a = jax.random.normal(k1, shape_a, dtype=jnp.float32)
    t_a = jax.random.normal(k2, shape_a, dtype=jnp.float32)
    loss_a = jax.block_until_ready(custom_mse(o_a, t_a))
    ref_a = _reference(o_a, t_a)
    assert jnp.allclose(loss_a, ref_a, rtol=1e-4, atol=1e-6), (loss_a, ref_a)

    # 2) Deliberately misaligned shape: exercises the ragged last row-block,
    #    the clamped duplicate step of the 2-way core split (odd block count),
    #    and the <128-element lane tail folded in by the wrapper.
    shape_b = (23, 131, 997)
    o_b = jax.random.normal(k3, shape_b, dtype=jnp.float32)
    t_b = jax.random.normal(k4, shape_b, dtype=jnp.float32)
    loss_b = jax.block_until_ready(custom_mse(o_b, t_b))
    ref_b = _reference(o_b, t_b)
    assert jnp.allclose(loss_b, ref_b, rtol=1e-4, atol=1e-6), (loss_b, ref_b)

    print("KERNEL_OK")
</pallas_src>

<mosaic_0001>
module attributes {stable_mosaic.version = 11 : i64} {
  func.func @kernel(%arg0: i32, %arg1: i32, %arg2: memref<2048x128xf32, #tpu.memory_space<vmem>>, %arg3: memref<2048x128xf32, #tpu.memory_space<vmem>>, %arg4: memref<8x128xf32, #tpu.memory_space<vmem>>) attributes {dimension_semantics = [#tpu.dimension_semantics<parallel>, #tpu.dimension_semantics<arbitrary>], iteration_bounds = array<i64: 2, 2>, scalar_prefetch = 0 : i64, scratch_operands = 0 : i64, tpu.core_type = #tpu.core_type<tc>, window_params = [{transform_indices = @transform_0, window_bounds = array<i64: 2048, 128>}, {transform_indices = @transform_1, window_bounds = array<i64: 2048, 128>}, {transform_indices = @transform_2, window_bounds = array<i64: 8, 128>}]} {
    %c0_i32 = arith.constant 0 : i32
    %0 = arith.cmpi eq, %arg1, %c0_i32 : i32
    %1 = arith.extui %0 : i1 to i32
    %c0_i32_0 = arith.constant 0 : i32
    %2 = arith.cmpi ne, %1, %c0_i32_0 : i32
    scf.if %2 {
      %cst_36 = arith.constant 0.000000e+00 : f32
      %55 = vector.broadcast %cst_36 : f32 to vector<8x128xf32>
      %c0_37 = arith.constant 0 : index
      %c0_38 = arith.constant 0 : index
      %56 = vector.load %arg4[%c0_37, %c0_38] : memref<8x128xf32, #tpu.memory_space<vmem>>, vector<8x128xf32>
      tpu.vector_store %arg4[%c0_37, %c0_38], %55 {strides = array<i32>} : memref<8x128xf32, #tpu.memory_space<vmem>>, vector<8x128xf32>,
    } else {
    }
    %c0 = arith.constant 0 : index
    %c0_1 = arith.constant 0 : index
    %3 = vector.load %arg2[%c0, %c0_1] : memref<2048x128xf32, #tpu.memory_space<vmem>>, vector<512x128xf32>
    %c0_2 = arith.constant 0 : index
    %c0_3 = arith.constant 0 : index
    %4 = vector.load %arg3[%c0_2, %c0_3] : memref<2048x128xf32, #tpu.memory_space<vmem>>, vector<512x128xf32>
    %5 = arith.subf %4, %3 : vector<512x128xf32>
    %6 = arith.mulf %5, %5 : vector<512x128xf32>
    %7 = math.tanh %4 : vector<512x128xf32>
    %cst = arith.constant 5.000000e-02 : f32
    %8 = vector.broadcast %cst : f32 to vector<512x128xf32>
    %9 = arith.addf %7, %8 : vector<512x128xf32>
    %10 = arith.mulf %6, %9 : vector<512x128xf32>
    %c0_4 = arith.constant 0 : index
    %c0_5 = arith.constant 0 : index
    %11 = vector.load %arg4[%c0_4, %c0_5] : memref<8x128xf32, #tpu.memory_space<vmem>>, vector<8x128xf32>
    %12 = vector.shape_cast %10 : vector<512x128xf32> to vector<64x8x128xf32>
    %cst_6 = arith.constant dense<0.000000e+00> : vector<8x128xf32>
    %13 = vector.multi_reduction <add>, %12, %cst_6 [0] : vector<64x8x128xf32> to vector<8x128xf32>
    %14 = arith.addf %11, %13 : vector<8x128xf32>
    %c0_7 = arith.constant 0 : index
    %c0_8 = arith.constant 0 : index
    %15 = vector.load %arg4[%c0_7, %c0_8] : memref<8x128xf32, #tpu.memory_space<vmem>>, vector<8x128xf32>
    tpu.vector_store %arg4[%c0_7, %c0_8], %14 {strides = array<i32>} : memref<8x128xf32, #tpu.memory_space<vmem>>, vector<8x128xf32>,
    %c512 = arith.constant 512 : index
    %c0_9 = arith.constant 0 : index
    %16 = vector.load %arg2[%c512, %c0_9] : memref<2048x128xf32, #tpu.memory_space<vmem>>, vector<512x128xf32>
    %c512_10 = arith.constant 512 : index
    %c0_11 = arith.constant 0 : index
    %17 = vector.load %arg3[%c512_10, %c0_11] : memref<2048x128xf32, #tpu.memory_space<vmem>>, vector<512x128xf32>
    %18 = arith.subf %17, %16 : vector<512x128xf32>
    %19 = arith.mulf %18, %18 : vector<512x128xf32>
    %20 = math.tanh %17 : vector<512x128xf32>
    %cst_12 = arith.constant 5.000000e-02 : f32
    %21 = vector.broadcast %cst_12 : f32 to vector<512x128xf32>
    %22 = arith.addf %20, %21 : vector<512x128xf32>
    %23 = arith.mulf %19, %22 : vector<512x128xf32>
    %c0_13 = arith.constant 0 : index
    %c0_14 = arith.constant 0 : index
    %24 = vector.load %arg4[%c0_13, %c0_14] : memref<8x128xf32, #tpu.memory_space<vmem>>, vector<8x128xf32>
    %25 = vector.shape_cast %23 : vector<512x128xf32> to vector<64x8x128xf32>
    %cst_15 = arith.constant dense<0.000000e+00> : vector<8x128xf32>
    %26 = vector.multi_reduction <add>, %25, %cst_15 [0] : vector<64x8x128xf32> to vector<8x128xf32>
    %27 = arith.addf %24, %26 : vector<8x128xf32>
    %c0_16 = arith.constant 0 : index
    %c0_17 = arith.constant 0 : index
    %28 = vector.load %arg4[%c0_16, %c0_17] : memref<8x128xf32, #tpu.memory_space<vmem>>, vector<8x128xf32>
    tpu.vector_store %arg4[%c0_16, %c0_17], %27 {strides = array<i32>} : memref<8x128xf32, #tpu.memory_space<vmem>>, vector<8x128xf32>,
    %c1024 = arith.constant 1024 : index
    %c0_18 = arith.constant 0 : index
    %29 = vector.load %arg2[%c1024, %c0_18] : memref<2048x128xf32, #tpu.memory_space<vmem>>, vector<512x128xf32>
    %c1024_19 = arith.constant 1024 : index
    %c0_20 = arith.constant 0 : index
    %30 = vector.load %arg3[%c1024_19, %c0_20] : memref<2048x128xf32, #tpu.memory_space<vmem>>, vector<512x128xf32>
    %31 = arith.subf %30, %29 : vector<512x128xf32>
    %32 = arith.mulf %31, %31 : vector<512x128xf32>
    %33 = math.tanh %30 : vector<512x128xf32>
    %cst_21 = arith.constant 5.000000e-02 : f32
    %34 = vector.broadcast %cst_21 : f32 to vector<512x128xf32>
    %35 = arith.addf %33, %34 : vector<512x128xf32>
    %36 = arith.mulf %32, %35 : vector<512x128xf32>
    %c0_22 = arith.constant 0 : index
    %c0_23 = arith.constant 0 : index
    %37 = vector.load %arg4[%c0_22, %c0_23] : memref<8x128xf32, #tpu.memory_space<vmem>>, vector<8x128xf32>
    %38 = vector.shape_cast %36 : vector<512x128xf32> to vector<64x8x128xf32>
    %cst_24 = arith.constant dense<0.000000e+00> : vector<8x128xf32>
    %39 = vector.multi_reduction <add>, %38, %cst_24 [0] : vector<64x8x128xf32> to vector<8x128xf32>
    %40 = arith.addf %37, %39 : vector<8x128xf32>
    %c0_25 = arith.constant 0 : index
    %c0_26 = arith.constant 0 : index
    %41 = vector.load %arg4[%c0_25, %c0_26] : memref<8x128xf32, #tpu.memory_space<vmem>>, vector<8x128xf32>
    tpu.vector_store %arg4[%c0_25, %c0_26], %40 {strides = array<i32>} : memref<8x128xf32, #tpu.memory_space<vmem>>, vector<8x128xf32>,
    %c1536 = arith.constant 1536 : index
    %c0_27 = arith.constant 0 : index
    %42 = vector.load %arg2[%c1536, %c0_27] : memref<2048x128xf32, #tpu.memory_space<vmem>>, vector<512x128xf32>
    %c1536_28 = arith.constant 1536 : index
    %c0_29 = arith.constant 0 : index
    %43 = vector.load %arg3[%c1536_28, %c0_29] : memref<2048x128xf32, #tpu.memory_space<vmem>>, vector<512x128xf32>
    %44 = arith.subf %43, %42 : vector<512x128xf32>
    %45 = arith.mulf %44, %44 : vector<512x128xf32>
    %46 = math.tanh %43 : vector<512x128xf32>
    %cst_30 = arith.constant 5.000000e-02 : f32
    %47 = vector.broadcast %cst_30 : f32 to vector<512x128xf32>
    %48 = arith.addf %46, %47 : vector<512x128xf32>
    %49 = arith.mulf %45, %48 : vector<512x128xf32>
    %c0_31 = arith.constant 0 : index
    %c0_32 = arith.constant 0 : index
    %50 = vector.load %arg4[%c0_31, %c0_32] : memref<8x128xf32, #tpu.memory_space<vmem>>, vector<8x128xf32>
    %51 = vector.shape_cast %49 : vector<512x128xf32> to vector<64x8x128xf32>
    %cst_33 = arith.constant dense<0.000000e+00> : vector<8x128xf32>
    %52 = vector.multi_reduction <add>, %51, %cst_33 [0] : vector<64x8x128xf32> to vector<8x128xf32>
    %53 = arith.addf %50, %52 : vector<8x128xf32>
    %c0_34 = arith.constant 0 : index
    %c0_35 = arith.constant 0 : index
    %54 = vector.load %arg4[%c0_34, %c0_35] : memref<8x128xf32, #tpu.memory_space<vmem>>, vector<8x128xf32>
    tpu.vector_store %arg4[%c0_34, %c0_35], %53 {strides = array<i32>} : memref<8x128xf32, #tpu.memory_space<vmem>>, vector<8x128xf32>,
    return
  }
  func.func @transform_0(%arg0: i32, %arg1: i32) -> (i32, i32) {
    %c2_i32 = arith.constant 2 : i32
    %0 = arith.muli %arg0, %c2_i32 : i32
    %1 = arith.addi %0, %arg1 : i32
    %c3_i32 = arith.constant 3 : i32
    %2 = arith.minsi %1, %c3_i32 : i32
    %c0_i32 = arith.constant 0 : i32
    %c0_i32_0 = arith.constant 0 : i32
    return %2, %c0_i32 : i32, i32
  }
  func.func @transform_1(%arg0: i32, %arg1: i32) -> (i32, i32) {
    %c2_i32 = arith.constant 2 : i32
    %0 = arith.muli %arg0, %c2_i32 : i32
    %1 = arith.addi %0, %arg1 : i32
    %c3_i32 = arith.constant 3 : i32
    %2 = arith.minsi %1, %c3_i32 : i32
    %c0_i32 = arith.constant 0 : i32
    %c0_i32_0 = arith.constant 0 : i32
    return %2, %c0_i32 : i32, i32
  }
  func.func @transform_2(%arg0: i32, %arg1: i32) -> (i32, i32) {
    %c0_i32 = arith.constant 0 : i32
    %c0_i32_0 = arith.constant 0 : i32
    return %arg0, %c0_i32 : i32, i32
  }
}

</mosaic_0001>

<llo_original>
// kernel: tpu_custom_call.1
$region0: #{tpu_custom_call.1}
  #allocation0 [shape = 'u32[]', space=smem, size = 0x4, offset = 0x4, fixed_abs, tag = 'smem constant byte address 0x4 - core index']
  #allocation1 [shape = 'u32[144,128]{1,0:T(1,128)}', space=vmem, size = 0x12000, scoped, tag = 'internal scratch']
  %s0 = inlined_call_operand.hbm [shape: f32[8192,128], index: 0, kind: input, shape index: {}]
  %s1 = inlined_call_operand.hbm [shape: f32[8192,128], index: 1, kind: input, shape index: {}]
  %s2 = inlined_call_operand.hbm [shape: f32[16,128], index: 2, kind: output, shape index: {}]
  %s3 = sld [smem:[#allocation0]]
  $region53: #{tpu_custom_call.1} parent=0
    _
  %s5 = ssub.s32 1, %s3
  %s6 = scalar_select 0, %s5, %s3
  $region1: #{tpu_custom_call.1} parent=0
    #allocation2 [shape = 'u8[2097152]{0}', space=vmem, size = 0x200000, scoped, tag = 'input window, operand 0']
    #allocation3 [shape = 's32[2]{0}', space=sflag, size = 0x8, scoped, tag = 'scoped memory for tpu_custom_call.1']
    #allocation4 [shape = 's32[2]{0}', space=sflag, size = 0x8, scoped, tag = 'scoped memory for tpu_custom_call.1']
    #allocation5 [shape = 'u8[2097152]{0}', space=vmem, size = 0x200000, scoped, tag = 'input window, operand 1']
    #allocation6 [shape = 's32[2]{0}', space=sflag, size = 0x8, scoped, tag = 'scoped memory for tpu_custom_call.1']
    #allocation7 [shape = 'u8[8192]{0}', space=vmem, size = 0x2000, scoped, tag = 'output window, operand 0']
    %7 = vsyncpa [#allocation3], 0
    %s8 = scalar_lea.sflag [#allocation3], 1
    %9 = vsyncpa %s8, 0
    %10 = vsyncpa [#allocation6], 0
    %s11 = scalar_lea.sflag [#allocation6], 1
    %12 = vsyncpa %s11, 0
    %13 = vsyncpa [#allocation4], 0
    %s14 = scalar_lea.sflag [#allocation4], 1
    %15 = vsyncpa %s14, 0
    loop: start=0, step=1, limit=6
    $region2: #{tpu_custom_call.1} parent=1 // loop_pre_header
      _
    $region3: #{tpu_custom_call.1} parent=1 // loop_header
      %s17 = sphi 0, %s21
      %p18 = scmp.ge.s32.totalorder %s17, 6
      %s24 = sphi 0, %s36
      %s25 = sphi 0, %s32
      %s26 = sphi 0, %s24
      %s27 = sphi 0, %s25
      %s28 = sphi 0, %s26
      %s29 = sphi 0, %s27
      %s47 = sphi 0, %s49
      %s50 = sphi 0, %s47
      %s51 = sphi 0, %s50
      %s67 = sphi 0, %s51
      %s81 = sphi 0, %s83
      %s84 = sphi 0, %s81
      %s85 = sphi 0, %s84
      %s101 = sphi 0, %s85
      %s107 = sphi 0, %s109
      %s110 = sphi 0, %s107
      %s111 = sphi 0, %s110
      %s127 = sphi 0, %s111
    $region4: #{tpu_custom_call.1} parent=1 // loop_header_branch
      %20 = sbr.rel (%p18) target = $region8
    $region5: #{tpu_custom_call.1} parent=1 // loop_body
      %s22 = ssub.s32 %s17, 1
      %s23 = ssub.s32 %s17, 2
      %s30 = sadd.s32 1, %s25
      %p31 = scmp.ge.s32.totalorder %s30, 2
      %s32 = scalar_select %p31, 0, %s30
      %s33 = sadd.s32 1, %s24
      %s34 = scalar_select %p31, %s33, %s24
      %p35 = scmp.ge.s32.totalorder %s34, 2
      %s36 = scalar_select %p35, 0, %s34
      %s37 = smul.u32 %s24, 2
      %s38 = sadd.s32 %s37, %s25
      %p39 = scmp.lt.s32.totalorder %s38, 3
      %s40 = scalar_select %p39, %s38, 3
      %s41 = smul.u32 %s36, 2
      %s42 = sadd.s32 %s41, %s32
      %p43 = scmp.lt.s32.totalorder %s42, 3
      %s44 = scalar_select %p43, %s42, 3
      %s45 = ssub.s32 %s40, %s44
      %p46 = scmp.eq.s32.totalorder %s45, 0
      %s48 = sadd.s32 %s47, 1
      %s49 = scalar_select %p46, %s47, %s48
      %p52 = pneg %p46
      %p53 = scmp.eq.s32.totalorder %s17, 3
      %p54 = por %p52, %p53
      %p55 = scmp.ne.s32.totalorder %s47, %s50
      %p56 = scmp.eq.s32.totalorder %s17, 0
      %p57 = por %p55, %p56
      %p58 = scmp.ne.s32.totalorder %s47, %s50
      %p59 = scmp.eq.s32.totalorder %s22, 3
      %p60 = por %p58, %p59
      %p61 = scmp.ne.s32.totalorder %s50, %s51
      %p62 = scmp.eq.s32.totalorder %s22, 0
      %p63 = por %p61, %p62
      %p64 = scmp.ne.s32.totalorder %s50, %s51
      %p65 = scmp.eq.s32.totalorder %s23, 3
      %p66 = por %p64, %p65
      %p68 = scmp.ne.s32.totalorder %s51, %s67
      %p69 = scmp.eq.s32.totalorder %s23, 0
      %p70 = por %p68, %p69
      %s71 = smul.u32 %s24, 2
      %s72 = sadd.s32 %s71, %s25
      %p73 = scmp.lt.s32.totalorder %s72, 3
      %s74 = scalar_select %p73, %s72, 3
      %s75 = smul.u32 %s36, 2
      %s76 = sadd.s32 %s75, %s32
      %p77 = scmp.lt.s32.totalorder %s76, 3
      %s78 = scalar_select %p77, %s76, 3
      %s79 = ssub.s32 %s74, %s78
      %p80 = scmp.eq.s32.totalorder %s79, 0
      %s82 = sadd.s32 %s81, 1
      %s83 = scalar_select %p80, %s81, %s82
      %p86 = pneg %p80
      %p87 = scmp.eq.s32.totalorder %s17, 3
      %p88 = por %p86, %p87
      %p89 = scmp.ne.s32.totalorder %s81, %s84
      %p90 = scmp.eq.s32.totalorder %s17, 0
      %p91 = por %p89, %p90
      %p92 = scmp.ne.s32.totalorder %s81, %s84
      %p93 = scmp.eq.s32.totalorder %s22, 3
      %p94 = por %p92, %p93
      %p95 = scmp.ne.s32.totalorder %s84, %s85
      %p96 = scmp.eq.s32.totalorder %s22, 0
      %p97 = por %p95, %p96
      %p98 = scmp.ne.s32.totalorder %s84, %s85
      %p99 = scmp.eq.s32.totalorder %s23, 3
      %p100 = por %p98, %p99
      %p102 = scmp.ne.s32.totalorder %s85, %s101
      %p103 = scmp.eq.s32.totalorder %s23, 0
      %p104 = por %p102, %p103
      %s105 = ssub.s32 %s24, %s36
      %p106 = scmp.eq.s32.totalorder %s105, 0
      %s108 = sadd.s32 %s107, 1
      %s109 = scalar_select %p106, %s107, %s108
      %p112 = pneg %p106
      %p113 = scmp.eq.s32.totalorder %s17, 3
      %p114 = por %p112, %p113
      %p115 = scmp.ne.s32.totalorder %s107, %s110
      %p116 = scmp.eq.s32.totalorder %s17, 0
      %p117 = por %p115, %p116
      %p118 = scmp.ne.s32.totalorder %s107, %s110
      %p119 = scmp.eq.s32.totalorder %s22, 3
      %p120 = por %p118, %p119
      %p121 = scmp.ne.s32.totalorder %s110, %s111
      %p122 = scmp.eq.s32.totalorder %s22, 0
      %p123 = por %p121, %p122
      %p124 = scmp.ne.s32.totalorder %s110, %s111
      %p125 = scmp.eq.s32.totalorder %s23, 3
      %p126 = por %p124, %p125
      %p128 = scmp.ne.s32.totalorder %s111, %s127
      %p129 = scmp.eq.s32.totalorder %s23, 0
      %p130 = por %p128, %p129
      %p131 = scmp.le.s32.totalorder 1, %s17
      %p132 = scmp.lt.s32.totalorder %s17, 5
      %p133 = pnand %p131, %p132
      %p134 = pneg %p133
      // Predicated region
      $region9: #{tpu_custom_call.1} parent=5 // pred_check
        _
      $region10: #{tpu_custom_call.1} parent=5 // pred_check_branch
        %136 = sbr.rel (%p133) target = $region12
      $region11: #{tpu_custom_call.1} parent=5 // pred_region
        %s137 = ssub.s32 %s17, 1
      $region12: #{tpu_custom_call.1} parent=5 // pred_fallthru
        _
      %p138 = scmp.lt.s32.totalorder %s17, 4
      // Predicated region
      $region13: #{tpu_custom_call.1} parent=5 // pred_check
        %p139 = pneg %p138
      $region14: #{tpu_custom_call.1} parent=5 // pred_check_branch
        %141 = sbr.rel (%p139) target = $region16
      $region15: #{tpu_custom_call.1} parent=5 // pred_region
        // Predicated region
        $region17: #{tpu_custom_call.1} parent=15 // pred_check
          %p142 = pneg %p57
        $region18: #{tpu_custom_call.1} parent=15 // pred_check_branch
          %144 = sbr.rel (%p142) target = $region20
        $region19: #{tpu_custom_call.1} parent=15 // pred_region
          %s145 = sand.u32 %s47, 1
          %s146 = scalar_lea.sflag [#allocation3], %s145
          %s147 = sand.u32 %s47, 1
          %s148 = smul.addr %s147, 2048
          %s149 = scalar_lea.vmem [#allocation2], %s148
          %s150 = smul.u32 %s24, 2
          %s151 = sadd.s32 %s150, %s25
          %p152 = scmp.lt.s32.totalorder %s151, 3
          %s153 = scalar_select %p152, %s151, 3
          %s154 = smul.u32 256, %s153
          %s156 = ssub.s32 32768, 32768
          %157 = vsyncadd %s146, %s156
          %s158 = smul.addr %s154, 128
          %s159 = scalar_lea.hbm %s0, %s158
          %s160 = sshll.u32 %s149, 4
          %s161 = int_to_ptr.vmem [resolvable:$true] %s160
          %166 = dma.hbm_to_vmem [thread:$0]  %s159, 32768, %s161, %s146, 128, 128, 8
        $region20: #{tpu_custom_call.1} parent=15 // pred_fallthru
          _
        // Predicated region
        $region21: #{tpu_custom_call.1} parent=15 // pred_check
          %p167 = pneg %p91
        $region22: #{tpu_custom_call.1} parent=15 // pred_check_branch
          %169 = sbr.rel (%p167) target = $region24
        $region23: #{tpu_custom_call.1} parent=15 // pred_region
          %s170 = sand.u32 %s81, 1
          %s171 = scalar_lea.sflag [#allocation6], %s170
          %s172 = sand.u32 %s81, 1
          %s173 = smul.addr %s172, 2048
          %s174 = scalar_lea.vmem [#allocation5], %s173
          %s175 = smul.u32 %s24, 2
          %s176 = sadd.s32 %s175, %s25
          %p177 = scmp.lt.s32.totalorder %s176, 3
          %s178 = scalar_select %p177, %s176, 3
          %s179 = smul.u32 256, %s178
          %s181 = ssub.s32 32768, 32768
          %182 = vsyncadd %s171, %s181
          %s183 = smul.addr %s179, 128
          %s184 = scalar_lea.hbm %s1, %s183
          %s185 = sshll.u32 %s174, 4
          %s186 = int_to_ptr.vmem [resolvable:$true] %s185
          %191 = dma.hbm_to_vmem [thread:$0]  %s184, 32768, %s186, %s171, 128, 128, 8
        $region24: #{tpu_custom_call.1} parent=15 // pred_fallthru
          _
      $region16: #{tpu_custom_call.1} parent=5 // pred_fallthru
        _
      %p192 = scmp.le.s32.totalorder 1, %s17
      %p193 = scmp.lt.s32.totalorder %s17, 5
      %p194 = pnand %p192, %p193
      %p195 = pneg %p194
      // Predicated region
      $region25: #{tpu_custom_call.1} parent=5 // pred_check
        _
      $region26: #{tpu_custom_call.1} parent=5 // pred_check_branch
        %197 = sbr.rel (%p194) target = $region28
      $region27: #{tpu_custom_call.1} parent=5 // pred_region
        %s198 = ssub.s32 %s17, 1
        %s199 = sand.u32 %s50, 1
        %s200 = scalar_lea.sflag [#allocation3], %s199
        %s201 = sand.u32 %s50, 1
        %s202 = smul.addr %s201, 2048
        %s203 = scalar_lea.vmem [#allocation2], %s202
        // Predicated region
        $region29: #{tpu_custom_call.1} parent=27 // pred_check
          %p204 = pneg %p63
        $region30: #{tpu_custom_call.1} parent=27 // pred_check_branch
          %206 = sbr.rel (%p204) target = $region32
        $region31: #{tpu_custom_call.1} parent=27 // pred_region
          %207 = dma.done %s200, 32768
        $region32: #{tpu_custom_call.1} parent=27 // pred_fallthru
          _
        %s208 = sand.u32 %s84, 1
        %s209 = scalar_lea.sflag [#allocation6], %s208
        %s210 = sand.u32 %s84, 1
        %s211 = smul.addr %s210, 2048
        %s212 = scalar_lea.vmem [#allocation5], %s211
        // Predicated region
        $region33: #{tpu_custom_call.1} parent=27 // pred_check
          %p213 = pneg %p97
        $region34: #{tpu_custom_call.1} parent=27 // pred_check_branch
          %215 = sbr.rel (%p213) target = $region36
        $region35: #{tpu_custom_call.1} parent=27 // pred_region
          %216 = dma.done %s209, 32768
        $region36: #{tpu_custom_call.1} parent=27 // pred_fallthru
          _
        %s217 = sand.u32 %s50, 1
        %s218 = scalar_lea.sflag [#allocation3], %s217
        %s219 = sand.u32 %s50, 1
        %s220 = smul.addr %s219, 2048
        %s221 = scalar_lea.vmem [#allocation2], %s220
        %p222 = pneg %p63
        %p223 = pneg %p60
        %s224 = sand.u32 %s84, 1
        %s225 = scalar_lea.sflag [#allocation6], %s224
        %s226 = sand.u32 %s84, 1
        %s227 = smul.addr %s226, 2048
        %s228 = scalar_lea.vmem [#allocation5], %s227
        %p229 = pneg %p97
        %p230 = pneg %p94
        %p231 = pneg %p123
        %p232 = pneg %p120
        %s233 = sand.u32 %s110, 1
        %s234 = scalar_lea.sflag [#allocation4], %s233
        %s235 = sand.u32 %s110, 1
        %s236 = smul.addr %s235, 8
        %s237 = scalar_lea.vmem [#allocation7], %s236
        %s238 = smul.u32 %s26, 2
        %s239 = sadd.s32 %s238, %s27
        %p240 = scmp.lt.s32.totalorder %s239, 3
        %s241 = scalar_select %p240, %s239, 3
        %s242 = smul.u32 256, %s241
        %s243 = smul.u32 %s26, 2
        %s244 = sadd.s32 %s243, %s27
        %p245 = scmp.lt.s32.totalorder %s244, 3
        %s246 = scalar_select %p245, %s244, 3
        %s247 = smul.u32 256, %s246
        %p248 = scmp.eq.s32.totalorder %s27, 0
        // Predicated region
        $region37: #{tpu_custom_call.1} parent=27 // pred_check
          %p249 = pneg %p248
        $region38: #{tpu_custom_call.1} parent=27 // pred_check_branch
          %251 = sbr.rel (%p249) target = $region40
        $region39: #{tpu_custom_call.1} parent=27 // pred_region
          %252 = vst [vmem:[%s237] sm:$0xff] 0.0
        $region40: #{tpu_custom_call.1} parent=27 // pred_fallthru
          _
        %v253 = vld [vmem:[%s203] sm:$0xff]
        %v254 = vld [vmem:[%s203 + $0x8] sm:$0xff]
        %v255 = vld [vmem:[%s203 + $0x10] sm:$0xff]
        %v256 = vld [vmem:[%s203 + $0x18] sm:$0xff]
        %v257 = vld [vmem:[%s203 + $0x20] sm:$0xff]
        %v258 = vld [vmem:[%s203 + $0x28] sm:$0xff]
        %v259 = vld [vmem:[%s203 + $0x30] sm:$0xff]
        %v260 = vld [vmem:[%s203 + $0x38] sm:$0xff]
        %v261 = vld [vmem:[%s203 + $0x40] sm:$0xff]
        %v262 = vld [vmem:[%s203 + $0x48] sm:$0xff]
        %v263 = vld [vmem:[%s203 + $0x50] sm:$0xff]
        %v264 = vld [vmem:[%s203 + $0x58] sm:$0xff]
        %v265 = vld [vmem:[%s203 + $0x60] sm:$0xff]
        %v266 = vld [vmem:[%s203 + $0x68] sm:$0xff]
        %v267 = vld [vmem:[%s203 + $0x70] sm:$0xff]
        %v268 = vld [vmem:[%s203 + $0x78] sm:$0xff]
        %v269 = vld [vmem:[%s203 + $0x80] sm:$0xff]
        %v270 = vld [vmem:[%s203 + $0x88] sm:$0xff]
        %v271 = vld [vmem:[%s203 + $0x90] sm:$0xff]
        %v272 = vld [vmem:[%s203 + $0x98] sm:$0xff]
        %v273 = vld [vmem:[%s203 + $0xa0] sm:$0xff]
        %v274 = vld [vmem:[%s203 + $0xa8] sm:$0xff]
        %v275 = vld [vmem:[%s203 + $0xb0] sm:$0xff]
        %v276 = vld [vmem:[%s203 + $0xb8] sm:$0xff]
        %v277 = vld [vmem:[%s203 + $0xc0] sm:$0xff]
        %v278 = vld [vmem:[%s203 + $0xc8] sm:$0xff]
        %v279 = vld [vmem:[%s203 + $0xd0] sm:$0xff]
        %v280 = vld [vmem:[%s203 + $0xd8] sm:$0xff]
        %v281 = vld [vmem:[%s203 + $0xe0] sm:$0xff]
        %v282 = vld [vmem:[%s203 + $0xe8] sm:$0xff]
        %v283 = vld [vmem:[%s203 + $0xf0] sm:$0xff]
        %v284 = vld [vmem:[%s203 + $0xf8] sm:$0xff]
        %v285 = vld [vmem:[%s203 + $0x100] sm:$0xff]
        %v286 = vld [vmem:[%s203 + $0x108] sm:$0xff]
        %v287 = vld [vmem:[%s203 + $0x110] sm:$0xff]
        %v288 = vld [vmem:[%s203 + $0x118] sm:$0xff]
        %v289 = vld [vmem:[%s203 + $0x120] sm:$0xff]
        %v290 = vld [vmem:[%s203 + $0x128] sm:$0xff]
        %v291 = vld [vmem:[%s203 + $0x130] sm:$0xff]
        %v292 = vld [vmem:[%s203 + $0x138] sm:$0xff]
        %v293 = vld [vmem:[%s203 + $0x140] sm:$0xff]
        %v294 = vld [vmem:[%s203 + $0x148] sm:$0xff]
        %v295 = vld [vmem:[%s203 + $0x150] sm:$0xff]
        %v296 = vld [vmem:[%s203 + $0x158] sm:$0xff]
        %v297 = vld [vmem:[%s203 + $0x160] sm:$0xff]
        %v298 = vld [vmem:[%s203 + $0x168] sm:$0xff]
        %v299 = vld [vmem:[%s203 + $0x170] sm:$0xff]
        %v300 = vld [vmem:[%s203 + $0x178] sm:$0xff]
        %v301 = vld [vmem:[%s203 + $0x180] sm:$0xff]
        %v302 = vld [vmem:[%s203 + $0x188] sm:$0xff]
        %v303 = vld [vmem:[%s203 + $0x190] sm:$0xff]
        %v304 = vld [vmem:[%s203 + $0x198] sm:$0xff]
        %v305 = vld [vmem:[%s203 + $0x1a0] sm:$0xff]
        %v306 = vld [vmem:[%s203 + $0x1a8] sm:$0xff]
        %v307 = vld [vmem:[%s203 + $0x1b0] sm:$0xff]
        %v308 = vld [vmem:[%s203 + $0x1b8] sm:$0xff]
        %v309 = vld [vmem:[%s203 + $0x1c0] sm:$0xff]
        %v310 = vld [vmem:[%s203 + $0x1c8] sm:$0xff]
        %v311 = vld [vmem:[%s203 + $0x1d0] sm:$0xff]
        %v312 = vld [vmem:[%s203 + $0x1d8] sm:$0xff]
        %v313 = vld [vmem:[%s203 + $0x1e0] sm:$0xff]
        %v314 = vld [vmem:[%s203 + $0x1e8] sm:$0xff]
        %v315 = vld [vmem:[%s203 + $0x1f0] sm:$0xff]
        %v316 = vld [vmem:[%s203 + $0x1f8] sm:$0xff]
        %v317 = vld [vmem:[%s212] sm:$0xff]
        %v318 = vld [vmem:[%s212 + $0x8] sm:$0xff]
        %v319 = vld [vmem:[%s212 + $0x10] sm:$0xff]
        %v320 = vld [vmem:[%s212 + $0x18] sm:$0xff]
        %v321 = vld [vmem:[%s212 + $0x20] sm:$0xff]
        %v322 = vld [vmem:[%s212 + $0x28] sm:$0xff]
        %v323 = vld [vmem:[%s212 + $0x30] sm:$0xff]
        %v324 = vld [vmem:[%s212 + $0x38] sm:$0xff]
        %v325 = vld [vmem:[%s212 + $0x40] sm:$0xff]
        %v326 = vld [vmem:[%s212 + $0x48] sm:$0xff]
        %v327 = vld [vmem:[%s212 + $0x50] sm:$0xff]
        %v328 = vld [vmem:[%s212 + $0x58] sm:$0xff]
        %v329 = vld [vmem:[%s212 + $0x60] sm:$0xff]
        %v330 = vld [vmem:[%s212 + $0x68] sm:$0xff]
        %v331 = vld [vmem:[%s212 + $0x70] sm:$0xff]
        %v332 = vld [vmem:[%s212 + $0x78] sm:$0xff]
        %v333 = vld [vmem:[%s212 + $0x80] sm:$0xff]
        %v334 = vld [vmem:[%s212 + $0x88] sm:$0xff]
        %v335 = vld [vmem:[%s212 + $0x90] sm:$0xff]
        %v336 = vld [vmem:[%s212 + $0x98] sm:$0xff]
        %v337 = vld [vmem:[%s212 + $0xa0] sm:$0xff]
        %v338 = vld [vmem:[%s212 + $0xa8] sm:$0xff]
        %v339 = vld [vmem:[%s212 + $0xb0] sm:$0xff]
        %v340 = vld [vmem:[%s212 + $0xb8] sm:$0xff]
        %v341 = vld [vmem:[%s212 + $0xc0] sm:$0xff]
        %v342 = vld [vmem:[%s212 + $0xc8] sm:$0xff]
        %v343 = vld [vmem:[%s212 + $0xd0] sm:$0xff]
        %v344 = vld [vmem:[%s212 + $0xd8] sm:$0xff]
        %v345 = vld [vmem:[%s212 + $0xe0] sm:$0xff]
        %v346 = vld [vmem:[%s212 + $0xe8] sm:$0xff]
        %v347 = vld [vmem:[%s212 + $0xf0] sm:$0xff]
        %v348 = vld [vmem:[%s212 + $0xf8] sm:$0xff]
        %v349 = vld [vmem:[%s212 + $0x100] sm:$0xff]
        %v350 = vld [vmem:[%s212 + $0x108] sm:$0xff]
        %v351 = vld [vmem:[%s212 + $0x110] sm:$0xff]
        %v352 = vld [vmem:[%s212 + $0x118] sm:$0xff]
        %v353 = vld [vmem:[%s212 + $0x120] sm:$0xff]
        %v354 = vld [vmem:[%s212 + $0x128] sm:$0xff]
        %v355 = vld [vmem:[%s212 + $0x130] sm:$0xff]
        %v356 = vld [vmem:[%s212 + $0x138] sm:$0xff]
        %v357 = vld [vmem:[%s212 + $0x140] sm:$0xff]
        %v358 = vld [vmem:[%s212 + $0x148] sm:$0xff]
        %v359 = vld [vmem:[%s212 + $0x150] sm:$0xff]
        %v360 = vld [vmem:[%s212 + $0x158] sm:$0xff]
        %v361 = vld [vmem:[%s212 + $0x160] sm:$0xff]
        %v362 = vld [vmem:[%s212 + $0x168] sm:$0xff]
        %v363 = vld [vmem:[%s212 + $0x170] sm:$0xff]
        %v364 = vld [vmem:[%s212 + $0x178] sm:$0xff]
        %v365 = vld [vmem:[%s212 + $0x180] sm:$0xff]
        %v366 = vld [vmem:[%s212 + $0x188] sm:$0xff]
        %v367 = vld [vmem:[%s212 + $0x190] sm:$0xff]
        %v368 = vld [vmem:[%s212 + $0x198] sm:$0xff]
        %v369 = vld [vmem:[%s212 + $0x1a0] sm:$0xff]
        %v370 = vld [vmem:[%s212 + $0x1a8] sm:$0xff]
        %v371 = vld [vmem:[%s212 + $0x1b0] sm:$0xff]
        %v372 = vld [vmem:[%s212 + $0x1b8] sm:$0xff]
        %v373 = vld [vmem:[%s212 + $0x1c0] sm:$0xff]
        %v374 = vld [vmem:[%s212 + $0x1c8] sm:$0xff]
        %v375 = vld [vmem:[%s212 + $0x1d0] sm:$0xff]
        %v376 = vld [vmem:[%s212 + $0x1d8] sm:$0xff]
        %v377 = vld [vmem:[%s212 + $0x1e0] sm:$0xff]
        %v378 = vld [vmem:[%s212 + $0x1e8] sm:$0xff]
        %v379 = vld [vmem:[%s212 + $0x1f0] sm:$0xff]
        %v380 = vld [vmem:[%s212 + $0x1f8] sm:$0xff]
        %v381 = vsub.f32 %v317, %v253
        %v382 = vsub.f32 %v318, %v254
        %v383 = vsub.f32 %v319, %v255
        %v384 = vsub.f32 %v320, %v256
        %v385 = vsub.f32 %v321, %v257
        %v386 = vsub.f32 %v322, %v258
        %v387 = vsub.f32 %v323, %v259
        %v388 = vsub.f32 %v324, %v260
        %v389 = vsub.f32 %v325, %v261
        %v390 = vsub.f32 %v326, %v262
        %v391 = vsub.f32 %v327, %v263
        %v392 = vsub.f32 %v328, %v264
        %v393 = vsub.f32 %v329, %v265
        %v394 = vsub.f32 %v330, %v266
        %v395 = vsub.f32 %v331, %v267
        %v396 = vsub.f32 %v332, %v268
        %v397 = vsub.f32 %v333, %v269
        %v398 = vsub.f32 %v334, %v270
        %v399 = vsub.f32 %v335, %v271
        %v400 = vsub.f32 %v336, %v272
        %v401 = vsub.f32 %v337, %v273
        %v402 = vsub.f32 %v338, %v274
        %v403 = vsub.f32 %v339, %v275
        %v404 = vsub.f32 %v340, %v276
        %v405 = vsub.f32 %v341, %v277
        %v406 = vsub.f32 %v342, %v278
        %v407 = vsub.f32 %v343, %v279
        %v408 = vsub.f32 %v344, %v280
        %v409 = vsub.f32 %v345, %v281
        %v410 = vsub.f32 %v346, %v282
        %v411 = vsub.f32 %v347, %v283
        %v412 = vsub.f32 %v348, %v284
        %v413 = vsub.f32 %v349, %v285
        %v414 = vsub.f32 %v350, %v286
        %v415 = vsub.f32 %v351, %v287
        %v416 = vsub.f32 %v352, %v288
        %v417 = vsub.f32 %v353, %v289
        %v418 = vsub.f32 %v354, %v290
        %v419 = vsub.f32 %v355, %v291
        %v420 = vsub.f32 %v356, %v292
        %v421 = vsub.f32 %v357, %v293
        %v422 = vsub.f32 %v358, %v294
        %v423 = vsub.f32 %v359, %v295
        %v424 = vsub.f32 %v360, %v296
        %v425 = vsub.f32 %v361, %v297
        %v426 = vsub.f32 %v362, %v298
        %v427 = vsub.f32 %v363, %v299
        %v428 = vsub.f32 %v364, %v300
        %v429 = vsub.f32 %v365, %v301
        %v430 = vsub.f32 %v366, %v302
        %v431 = vsub.f32 %v367, %v303
        %v432 = vsub.f32 %v368, %v304
        %v433 = vsub.f32 %v369, %v305
        %v434 = vsub.f32 %v370, %v306
        %v435 = vsub.f32 %v371, %v307
        %v436 = vsub.f32 %v372, %v308
        %v437 = vsub.f32 %v373, %v309
        %v438 = vsub.f32 %v374, %v310
        %v439 = vsub.f32 %v375, %v311
        %v440 = vsub.f32 %v376, %v312
        %v441 = vsub.f32 %v377, %v313
        %v442 = vsub.f32 %v378, %v314
        %v443 = vsub.f32 %v379, %v315
        %v444 = vsub.f32 %v380, %v316
        %v445 = vmul.f32 %v381, %v381
        %v446 = vmul.f32 %v382, %v382
        %v447 = vmul.f32 %v383, %v383
        %v448 = vmul.f32 %v384, %v384
        %v449 = vmul.f32 %v385, %v385
        %v450 = vmul.f32 %v386, %v386
        %v451 = vmul.f32 %v387, %v387
        %v452 = vmul.f32 %v388, %v388
        %v453 = vmul.f32 %v389, %v389
        %v454 = vmul.f32 %v390, %v390
        %v455 = vmul.f32 %v391, %v391
        %v456 = vmul.f32 %v392, %v392
        %v457 = vmul.f32 %v393, %v393
        %v458 = vmul.f32 %v394, %v394
        %v459 = vmul.f32 %v395, %v395
        %v460 = vmul.f32 %v396, %v396
        %v461 = vmul.f32 %v397, %v397
        %v462 = vmul.f32 %v398, %v398
        %v463 = vmul.f32 %v399, %v399
        %v464 = vmul.f32 %v400, %v400
        %v465 = vmul.f32 %v401, %v401
        %v466 = vmul.f32 %v402, %v402
        %v467 = vmul.f32 %v403, %v403
        %v468 = vmul.f32 %v404, %v404
        %v469 = vmul.f32 %v405, %v405
        %v470 = vmul.f32 %v406, %v406
        %v471 = vmul.f32 %v407, %v407
        %v472 = vmul.f32 %v408, %v408
        %v473 = vmul.f32 %v409, %v409
        %v474 = vmul.f32 %v410, %v410
        %v475 = vmul.f32 %v411, %v411
        %v476 = vmul.f32 %v412, %v412
        %v477 = vmul.f32 %v413, %v413
        %v478 = vmul.f32 %v414, %v414
        %v479 = vmul.f32 %v415, %v415
        %v480 = vmul.f32 %v416, %v416
        %v481 = vmul.f32 %v417, %v417
        %v482 = vmul.f32 %v418, %v418
        %v483 = vmul.f32 %v419, %v419
        %v484 = vmul.f32 %v420, %v420
        %v485 = vmul.f32 %v421, %v421
        %v486 = vmul.f32 %v422, %v422
        %v487 = vmul.f32 %v423, %v423
        %v488 = vmul.f32 %v424, %v424
        %v489 = vmul.f32 %v425, %v425
        %v490 = vmul.f32 %v426, %v426
        %v491 = vmul.f32 %v427, %v427
        %v492 = vmul.f32 %v428, %v428
        %v493 = vmul.f32 %v429, %v429
        %v494 = vmul.f32 %v430, %v430
        %v495 = vmul.f32 %v431, %v431
        %v496 = vmul.f32 %v432, %v432
        %v497 = vmul.f32 %v433, %v433
        %v498 = vmul.f32 %v434, %v434
        %v499 = vmul.f32 %v435, %v435
        %v500 = vmul.f32 %v436, %v436
        %v501 = vmul.f32 %v437, %v437
        %v502 = vmul.f32 %v438, %v438
        %v503 = vmul.f32 %v439, %v439
        %v504 = vmul.f32 %v440, %v440
        %v505 = vmul.f32 %v441, %v441
        %v506 = vmul.f32 %v442, %v442
        %v507 = vmul.f32 %v443, %v443
        %v508 = vmul.f32 %v444, %v444
        %v509 = vtanh.pop %v317
        %v510 = vtanh.pop %v318
        %v511 = vtanh.pop %v319
        %v512 = vtanh.pop %v320
        %v513 = vtanh.pop %v321
        %v514 = vtanh.pop %v322
        %v515 = vtanh.pop %v323
        %v516 = vtanh.pop %v324
        %v517 = vtanh.pop %v325
        %v518 = vtanh.pop %v326
        %v519 = vtanh.pop %v327
        %v520 = vtanh.pop %v328
        %v521 = vtanh.pop %v329
        %v522 = vtanh.pop %v330
        %v523 = vtanh.pop %v331
        %v524 = vtanh.pop %v332
        %v525 = vtanh.pop %v333
        %v526 = vtanh.pop %v334
        %v527 = vtanh.pop %v335
        %v528 = vtanh.pop %v336
        %v529 = vtanh.pop %v337
        %v530 = vtanh.pop %v338
        %v531 = vtanh.pop %v339
        %v532 = vtanh.pop %v340
        %v533 = vtanh.pop %v341
        %v534 = vtanh.pop %v342
        %v535 = vtanh.pop %v343
        %v536 = vtanh.pop %v344
        %v537 = vtanh.pop %v345
        %v538 = vtanh.pop %v346
        %v539 = vtanh.pop %v347
        %v540 = vtanh.pop %v348
        %v541 = vtanh.pop %v349
        %v542 = vtanh.pop %v350
        %v543 = vtanh.pop %v351
        %v544 = vtanh.pop %v352
        %v545 = vtanh.pop %v353
        %v546 = vtanh.pop %v354
        %v547 = vtanh.pop %v355
        %v548 = vtanh.pop %v356
        %v549 = vtanh.pop %v357
        %v550 = vtanh.pop %v358
        %v551 = vtanh.pop %v359
        %v552 = vtanh.pop %v360
        %v553 = vtanh.pop %v361
        %v554 = vtanh.pop %v362
        %v555 = vtanh.pop %v363
        %v556 = vtanh.pop %v364
        %v557 = vtanh.pop %v365
        %v558 = vtanh.pop %v366
        %v559 = vtanh.pop %v367
        %v560 = vtanh.pop %v368
        %v561 = vtanh.pop %v369
        %v562 = vtanh.pop %v370
        %v563 = vtanh.pop %v371
        %v564 = vtanh.pop %v372
        %v565 = vtanh.pop %v373
        %v566 = vtanh.pop %v374
        %v567 = vtanh.pop %v375
        %v568 = vtanh.pop %v376
        %v569 = vtanh.pop %v377
        %v570 = vtanh.pop %v378
        %v571 = vtanh.pop %v379
        %v572 = vtanh.pop %v380
        %v573 = vadd.f32 %v509, 0.05
        %v574 = vadd.f32 %v510, 0.05
        %v575 = vadd.f32 %v511, 0.05
        %v576 = vadd.f32 %v512, 0.05
        %v577 = vadd.f32 %v513, 0.05
        %v578 = vadd.f32 %v514, 0.05
        %v579 = vadd.f32 %v515, 0.05
        %v580 = vadd.f32 %v516, 0.05
        %v581 = vadd.f32 %v517, 0.05
        %v582 = vadd.f32 %v518, 0.05
        %v583 = vadd.f32 %v519, 0.05
        %v584 = vadd.f32 %v520, 0.05
        %v585 = vadd.f32 %v521, 0.05
        %v586 = vadd.f32 %v522, 0.05
        %v587 = vadd.f32 %v523, 0.05
        %v588 = vadd.f32 %v524, 0.05
        %v589 = vadd.f32 %v525, 0.05
        %v590 = vadd.f32 %v526, 0.05
        %v591 = vadd.f32 %v527, 0.05
        %v592 = vadd.f32 %v528, 0.05
        %v593 = vadd.f32 %v529, 0.05
        %v594 = vadd.f32 %v530, 0.05
        %v595 = vadd.f32 %v531, 0.05
        %v596 = vadd.f32 %v532, 0.05
        %v597 = vadd.f32 %v533, 0.05
        %v598 = vadd.f32 %v534, 0.05
        %v599 = vadd.f32 %v535, 0.05
        %v600 = vadd.f32 %v536, 0.05
        %v601 = vadd.f32 %v537, 0.05
        %v602 = vadd.f32 %v538, 0.05
        %v603 = vadd.f32 %v539, 0.05
        %v604 = vadd.f32 %v540, 0.05
        %v605 = vadd.f32 %v541, 0.05
        %v606 = vadd.f32 %v542, 0.05
        %v607 = vadd.f32 %v543, 0.05
        %v608 = vadd.f32 %v544, 0.05
        %v609 = vadd.f32 %v545, 0.05
        %v610 = vadd.f32 %v546, 0.05
        %v611 = vadd.f32 %v547, 0.05
        %v612 = vadd.f32 %v548, 0.05
        %v613 = vadd.f32 %v549, 0.05
        %v614 = vadd.f32 %v550, 0.05
        %v615 = vadd.f32 %v551, 0.05
        %v616 = vadd.f32 %v552, 0.05
        %v617 = vadd.f32 %v553, 0.05
        %v618 = vadd.f32 %v554, 0.05
        %v619 = vadd.f32 %v555, 0.05
        %v620 = vadd.f32 %v556, 0.05
        %v621 = vadd.f32 %v557, 0.05
        %v622 = vadd.f32 %v558, 0.05
        %v623 = vadd.f32 %v559, 0.05
        %v624 = vadd.f32 %v560, 0.05
        %v625 = vadd.f32 %v561, 0.05
        %v626 = vadd.f32 %v562, 0.05
        %v627 = vadd.f32 %v563, 0.05
        %v628 = vadd.f32 %v564, 0.05
        %v629 = vadd.f32 %v565, 0.05
        %v630 = vadd.f32 %v566, 0.05
        %v631 = vadd.f32 %v567, 0.05
        %v632 = vadd.f32 %v568, 0.05
        %v633 = vadd.f32 %v569, 0.05
        %v634 = vadd.f32 %v570, 0.05
        %v635 = vadd.f32 %v571, 0.05
        %v636 = vadd.f32 %v572, 0.05
        %v637 = vmul.f32 %v445, %v573
        %v638 = vmul.f32 %v446, %v574
        %v639 = vmul.f32 %v447, %v575
        %v640 = vmul.f32 %v448, %v576
        %v641 = vmul.f32 %v449, %v577
        %v642 = vmul.f32 %v450, %v578
        %v643 = vmul.f32 %v451, %v579
        %v644 = vmul.f32 %v452, %v580
        %v645 = vmul.f32 %v453, %v581
        %v646 = vmul.f32 %v454, %v582
        %v647 = vmul.f32 %v455, %v583
        %v648 = vmul.f32 %v456, %v584
        %v649 = vmul.f32 %v457, %v585
        %v650 = vmul.f32 %v458, %v586
        %v651 = vmul.f32 %v459, %v587
        %v652 = vmul.f32 %v460, %v588
        %v653 = vmul.f32 %v461, %v589
        %v654 = vmul.f32 %v462, %v590
        %v655 = vmul.f32 %v463, %v591
        %v656 = vmul.f32 %v464, %v592
        %v657 = vmul.f32 %v465, %v593
        %v658 = vmul.f32 %v466, %v594
        %v659 = vmul.f32 %v467, %v595
        %v660 = vmul.f32 %v468, %v596
        %v661 = vmul.f32 %v469, %v597
        %v662 = vmul.f32 %v470, %v598
        %v663 = vmul.f32 %v471, %v599
        %v664 = vmul.f32 %v472, %v600
        %v665 = vmul.f32 %v473, %v601
        %v666 = vmul.f32 %v474, %v602
        %v667 = vmul.f32 %v475, %v603
        %v668 = vmul.f32 %v476, %v604
        %v669 = vmul.f32 %v477, %v605
        %v670 = vmul.f32 %v478, %v606
        %v671 = vmul.f32 %v479, %v607
        %v672 = vmul.f32 %v480, %v608
        %v673 = vmul.f32 %v481, %v609
        %v674 = vmul.f32 %v482, %v610
        %v675 = vmul.f32 %v483, %v611
        %v676 = vmul.f32 %v484, %v612
        %v677 = vmul.f32 %v485, %v613
        %v678 = vmul.f32 %v486, %v614
        %v679 = vmul.f32 %v487, %v615
        %v680 = vmul.f32 %v488, %v616
        %v681 = vmul.f32 %v489, %v617
        %v682 = vmul.f32 %v490, %v618
        %v683 = vmul.f32 %v491, %v619
        %v684 = vmul.f32 %v492, %v620
        %v685 = vmul.f32 %v493, %v621
        %v686 = vmul.f32 %v494, %v622
        %v687 = vmul.f32 %v495, %v623
        %v688 = vmul.f32 %v496, %v624
        %v689 = vmul.f32 %v497, %v625
        %v690 = vmul.f32 %v498, %v626
        %v691 = vmul.f32 %v499, %v627
        %v692 = vmul.f32 %v500, %v628
        %v693 = vmul.f32 %v501, %v629
        %v694 = vmul.f32 %v502, %v630
        %v695 = vmul.f32 %v503, %v631
        %v696 = vmul.f32 %v504, %v632
        %v697 = vmul.f32 %v505, %v633
        %v698 = vmul.f32 %v506, %v634
        %v699 = vmul.f32 %v507, %v635
        %v700 = vmul.f32 %v508, %v636
        %v701 = vld [vmem:[%s237] sm:$0xff]
        %v702 = vadd.f32 %v637, %v638
        %v703 = vadd.f32 %v702, %v639
        %v704 = vadd.f32 %v703, %v640
        %v705 = vadd.f32 %v704, %v641
        %v706 = vadd.f32 %v705, %v642
        %v707 = vadd.f32 %v706, %v643
        %v708 = vadd.f32 %v707, %v644
        %v709 = vadd.f32 %v708, %v645
        %v710 = vadd.f32 %v709, %v646
        %v711 = vadd.f32 %v710, %v647
        %v712 = vadd.f32 %v711, %v648
        %v713 = vadd.f32 %v712, %v649
        %v714 = vadd.f32 %v713, %v650
        %v715 = vadd.f32 %v714, %v651
        %v716 = vadd.f32 %v715, %v652
        %v717 = vadd.f32 %v716, %v653
        %v718 = vadd.f32 %v717, %v654
        %v719 = vadd.f32 %v718, %v655
        %v720 = vadd.f32 %v719, %v656
        %v721 = vadd.f32 %v720, %v657
        %v722 = vadd.f32 %v721, %v658
        %v723 = vadd.f32 %v722, %v659
        %v724 = vadd.f32 %v723, %v660
        %v725 = vadd.f32 %v724, %v661
        %v726 = vadd.f32 %v725, %v662
        %v727 = vadd.f32 %v726, %v663
        %v728 = vadd.f32 %v727, %v664
        %v729 = vadd.f32 %v728, %v665
        %v730 = vadd.f32 %v729, %v666
        %v731 = vadd.f32 %v730, %v667
        %v732 = vadd.f32 %v731, %v668
        %v733 = vadd.f32 %v732, %v669
        %v734 = vadd.f32 %v733, %v670
        %v735 = vadd.f32 %v734, %v671
        %v736 = vadd.f32 %v735, %v672
        %v737 = vadd.f32 %v736, %v673
        %v738 = vadd.f32 %v737, %v674
        %v739 = vadd.f32 %v738, %v675
        %v740 = vadd.f32 %v739, %v676
        %v741 = vadd.f32 %v740, %v677
        %v742 = vadd.f32 %v741, %v678
        %v743 = vadd.f32 %v742, %v679
        %v744 = vadd.f32 %v743, %v680
        %v745 = vadd.f32 %v744, %v681
        %v746 = vadd.f32 %v745, %v682
        %v747 = vadd.f32 %v746, %v683
        %v748 = vadd.f32 %v747, %v684
        %v749 = vadd.f32 %v748, %v685
        %v750 = vadd.f32 %v749, %v686
        %v751 = vadd.f32 %v750, %v687
        %v752 = vadd.f32 %v751, %v688
        %v753 = vadd.f32 %v752, %v689
        %v754 = vadd.f32 %v753, %v690
        %v755 = vadd.f32 %v754, %v691
        %v756 = vadd.f32 %v755, %v692
        %v757 = vadd.f32 %v756, %v693
        %v758 = vadd.f32 %v757, %v694
        %v759 = vadd.f32 %v758, %v695
        %v760 = vadd.f32 %v759, %v696
        %v761 = vadd.f32 %v760, %v697
        %v762 = vadd.f32 %v761, %v698
        %v763 = vadd.f32 %v762, %v699
        %v764 = vadd.f32 %v763, %v700
        %v765 = vadd.f32 %v701, %v764
        %766 = vst [vmem:[%s237] sm:$0xff] %v765
        %v767 = vld [vmem:[%s203 + $0x200] sm:$0xff]
        %v768 = vld [vmem:[%s203 + $0x208] sm:$0xff]
        %v769 = vld [vmem:[%s203 + $0x210] sm:$0xff]
        %v770 = vld [vmem:[%s203 + $0x218] sm:$0xff]
        %v771 = vld [vmem:[%s203 + $0x220] sm:$0xff]
        %v772 = vld [vmem:[%s203 + $0x228] sm:$0xff]
        %v773 = vld [vmem:[%s203 + $0x230] sm:$0xff]
        %v774 = vld [vmem:[%s203 + $0x238] sm:$0xff]
        %v775 = vld [vmem:[%s203 + $0x240] sm:$0xff]
        %v776 = vld [vmem:[%s203 + $0x248] sm:$0xff]
        %v777 = vld [vmem:[%s203 + $0x250] sm:$0xff]
        %v778 = vld [vmem:[%s203 + $0x258] sm:$0xff]
        %v779 = vld [vmem:[%s203 + $0x260] sm:$0xff]
        %v780 = vld [vmem:[%s203 + $0x268] sm:$0xff]
        %v781 = vld [vmem:[%s203 + $0x270] sm:$0xff]
        %v782 = vld [vmem:[%s203 + $0x278] sm:$0xff]
        %v783 = vld [vmem:[%s203 + $0x280] sm:$0xff]
        %v784 = vld [vmem:[%s203 + $0x288] sm:$0xff]
        %v785 = vld [vmem:[%s203 + $0x290] sm:$0xff]
        %v786 = vld [vmem:[%s203 + $0x298] sm:$0xff]
        %v787 = vld [vmem:[%s203 + $0x2a0] sm:$0xff]
        %v788 = vld [vmem:[%s203 + $0x2a8] sm:$0xff]
        %v789 = vld [vmem:[%s203 + $0x2b0] sm:$0xff]
        %v790 = vld [vmem:[%s203 + $0x2b8] sm:$0xff]
        %v791 = vld [vmem:[%s203 + $0x2c0] sm:$0xff]
        %v792 = vld [vmem:[%s203 + $0x2c8] sm:$0xff]
        %v793 = vld [vmem:[%s203 + $0x2d0] sm:$0xff]
        %v794 = vld [vmem:[%s203 + $0x2d8] sm:$0xff]
        %v795 = vld [vmem:[%s203 + $0x2e0] sm:$0xff]
        %v796 = vld [vmem:[%s203 + $0x2e8] sm:$0xff]
        %v797 = vld [vmem:[%s203 + $0x2f0] sm:$0xff]
        %v798 = vld [vmem:[%s203 + $0x2f8] sm:$0xff]
        %v799 = vld [vmem:[%s203 + $0x300] sm:$0xff]
        %v800 = vld [vmem:[%s203 + $0x308] sm:$0xff]
        %v801 = vld [vmem:[%s203 + $0x310] sm:$0xff]
        %v802 = vld [vmem:[%s203 + $0x318] sm:$0xff]
        %v803 = vld [vmem:[%s203 + $0x320] sm:$0xff]
        %v804 = vld [vmem:[%s203 + $0x328] sm:$0xff]
        %v805 = vld [vmem:[%s203 + $0x330] sm:$0xff]
        %v806 = vld [vmem:[%s203 + $0x338] sm:$0xff]
        %v807 = vld [vmem:[%s203 + $0x340] sm:$0xff]
        %v808 = vld [vmem:[%s203 + $0x348] sm:$0xff]
        %v809 = vld [vmem:[%s203 + $0x350] sm:$0xff]
        %v810 = vld [vmem:[%s203 + $0x358] sm:$0xff]
        %v811 = vld [vmem:[%s203 + $0x360] sm:$0xff]
        %v812 = vld [vmem:[%s203 + $0x368] sm:$0xff]
        %v813 = vld [vmem:[%s203 + $0x370] sm:$0xff]
        %v814 = vld [vmem:[%s203 + $0x378] sm:$0xff]
        %v815 = vld [vmem:[%s203 + $0x380] sm:$0xff]
        %v816 = vld [vmem:[%s203 + $0x388] sm:$0xff]
        %v817 = vld [vmem:[%s203 + $0x390] sm:$0xff]
        %v818 = vld [vmem:[%s203 + $0x398] sm:$0xff]
        %v819 = vld [vmem:[%s203 + $0x3a0] sm:$0xff]
        %v820 = vld [vmem:[%s203 + $0x3a8] sm:$0xff]
        %v821 = vld [vmem:[%s203 + $0x3b0] sm:$0xff]
        %v822 = vld [vmem:[%s203 + $0x3b8] sm:$0xff]
        %v823 = vld [vmem:[%s203 + $0x3c0] sm:$0xff]
        %v824 = vld [vmem:[%s203 + $0x3c8] sm:$0xff]
        %v825 = vld [vmem:[%s203 + $0x3d0] sm:$0xff]
        %v826 = vld [vmem:[%s203 + $0x3d8] sm:$0xff]
        %v827 = vld [vmem:[%s203 + $0x3e0] sm:$0xff]
        %v828 = vld [vmem:[%s203 + $0x3e8] sm:$0xff]
        %v829 = vld [vmem:[%s203 + $0x3f0] sm:$0xff]
        %v830 = vld [vmem:[%s203 + $0x3f8] sm:$0xff]
        %v831 = vld [vmem:[%s212 + $0x200] sm:$0xff]
        %v832 = vld [vmem:[%s212 + $0x208] sm:$0xff]
        %v833 = vld [vmem:[%s212 + $0x210] sm:$0xff]
        %v834 = vld [vmem:[%s212 + $0x218] sm:$0xff]
        %v835 = vld [vmem:[%s212 + $0x220] sm:$0xff]
        %v836 = vld [vmem:[%s212 + $0x228] sm:$0xff]
        %v837 = vld [vmem:[%s212 + $0x230] sm:$0xff]
        %v838 = vld [vmem:[%s212 + $0x238] sm:$0xff]
        %v839 = vld [vmem:[%s212 + $0x240] sm:$0xff]
        %v840 = vld [vmem:[%s212 + $0x248] sm:$0xff]
        %v841 = vld [vmem:[%s212 + $0x250] sm:$0xff]
        %v842 = vld [vmem:[%s212 + $0x258] sm:$0xff]
        %v843 = vld [vmem:[%s212 + $0x260] sm:$0xff]
        %v844 = vld [vmem:[%s212 + $0x268] sm:$0xff]
        %v845 = vld [vmem:[%s212 + $0x270] sm:$0xff]
        %v846 = vld [vmem:[%s212 + $0x278] sm:$0xff]
        %v847 = vld [vmem:[%s212 + $0x280] sm:$0xff]
        %v848 = vld [vmem:[%s212 + $0x288] sm:$0xff]
        %v849 = vld [vmem:[%s212 + $0x290] sm:$0xff]
        %v850 = vld [vmem:[%s212 + $0x298] sm:$0xff]
        %v851 = vld [vmem:[%s212 + $0x2a0] sm:$0xff]
        %v852 = vld [vmem:[%s212 + $0x2a8] sm:$0xff]
        %v853 = vld [vmem:[%s212 + $0x2b0] sm:$0xff]
        %v854 = vld [vmem:[%s212 + $0x2b8] sm:$0xff]
        %v855 = vld [vmem:[%s212 + $0x2c0] sm:$0xff]
        %v856 = vld [vmem:[%s212 + $0x2c8] sm:$0xff]
        %v857 = vld [vmem:[%s212 + $0x2d0] sm:$0xff]
        %v858 = vld [vmem:[%s212 + $0x2d8] sm:$0xff]
        %v859 = vld [vmem:[%s212 + $0x2e0] sm:$0xff]
        %v860 = vld [vmem:[%s212 + $0x2e8] sm:$0xff]
        %v861 = vld [vmem:[%s212 + $0x2f0] sm:$0xff]
        %v862 = vld [vmem:[%s212 + $0x2f8] sm:$0xff]
        %v863 = vld [vmem:[%s212 + $0x300] sm:$0xff]
        %v864 = vld [vmem:[%s212 + $0x308] sm:$0xff]
        %v865 = vld [vmem:[%s212 + $0x310] sm:$0xff]
        %v866 = vld [vmem:[%s212 + $0x318] sm:$0xff]
        %v867 = vld [vmem:[%s212 + $0x320] sm:$0xff]
        %v868 = vld [vmem:[%s212 + $0x328] sm:$0xff]
        %v869 = vld [vmem:[%s212 + $0x330] sm:$0xff]
        %v870 = vld [vmem:[%s212 + $0x338] sm:$0xff]
        %v871 = vld [vmem:[%s212 + $0x340] sm:$0xff]
        %v872 = vld [vmem:[%s212 + $0x348] sm:$0xff]
        %v873 = vld [vmem:[%s212 + $0x350] sm:$0xff]
        %v874 = vld [vmem:[%s212 + $0x358] sm:$0xff]
        %v875 = vld [vmem:[%s212 + $0x360] sm:$0xff]
        %v876 = vld [vmem:[%s212 + $0x368] sm:$0xff]
        %v877 = vld [vmem:[%s212 + $0x370] sm:$0xff]
        %v878 = vld [vmem:[%s212 + $0x378] sm:$0xff]
        %v879 = vld [vmem:[%s212 + $0x380] sm:$0xff]
        %v880 = vld [vmem:[%s212 + $0x388] sm:$0xff]
        %v881 = vld [vmem:[%s212 + $0x390] sm:$0xff]
        %v882 = vld [vmem:[%s212 + $0x398] sm:$0xff]
        %v883 = vld [vmem:[%s212 + $0x3a0] sm:$0xff]
        %v884 = vld [vmem:[%s212 + $0x3a8] sm:$0xff]
        %v885 = vld [vmem:[%s212 + $0x3b0] sm:$0xff]
        %v886 = vld [vmem:[%s212 + $0x3b8] sm:$0xff]
        %v887 = vld [vmem:[%s212 + $0x3c0] sm:$0xff]
        %v888 = vld [vmem:[%s212 + $0x3c8] sm:$0xff]
        %v889 = vld [vmem:[%s212 + $0x3d0] sm:$0xff]
        %v890 = vld [vmem:[%s212 + $0x3d8] sm:$0xff]
        %v891 = vld [vmem:[%s212 + $0x3e0] sm:$0xff]
        %v892 = vld [vmem:[%s212 + $0x3e8] sm:$0xff]
        %v893 = vld [vmem:[%s212 + $0x3f0] sm:$0xff]
        %v894 = vld [vmem:[%s212 + $0x3f8] sm:$0xff]
        %v895 = vsub.f32 %v831, %v767
        %v896 = vsub.f32 %v832, %v768
        %v897 = vsub.f32 %v833, %v769
        %v898 = vsub.f32 %v834, %v770
        %v899 = vsub.f32 %v835, %v771
        %v900 = vsub.f32 %v836, %v772
        %v901 = vsub.f32 %v837, %v773
        %v902 = vsub.f32 %v838, %v774
        %v903 = vsub.f32 %v839, %v775
        %v904 = vsub.f32 %v840, %v776
        %v905 = vsub.f32 %v841, %v777
        %v906 = vsub.f32 %v842, %v778
        %v907 = vsub.f32 %v843, %v779
        %v908 = vsub.f32 %v844, %v780
        %v909 = vsub.f32 %v845, %v781
        %v910 = vsub.f32 %v846, %v782
        %v911 = vsub.f32 %v847, %v783
        %v912 = vsub.f32 %v848, %v784
        %v913 = vsub.f32 %v849, %v785
        %v914 = vsub.f32 %v850, %v786
        %v915 = vsub.f32 %v851, %v787
        %v916 = vsub.f32 %v852, %v788
        %v917 = vsub.f32 %v853, %v789
        %v918 = vsub.f32 %v854, %v790
        %v919 = vsub.f32 %v855, %v791
        %v920 = vsub.f32 %v856, %v792
        %v921 = vsub.f32 %v857, %v793
        %v922 = vsub.f32 %v858, %v794
        %v923 = vsub.f32 %v859, %v795
        %v924 = vsub.f32 %v860, %v796
        %v925 = vsub.f32 %v861, %v797
        %v926 = vsub.f32 %v862, %v798
        %v927 = vsub.f32 %v863, %v799
        %v928 = vsub.f32 %v864, %v800
        %v929 = vsub.f32 %v865, %v801
        %v930 = vsub.f32 %v866, %v802
        %v931 = vsub.f32 %v867, %v803
        %v932 = vsub.f32 %v868, %v804
        %v933 = vsub.f32 %v869, %v805
        %v934 = vsub.f32 %v870, %v806
        %v935 = vsub.f32 %v871, %v807
        %v936 = vsub.f32 %v872, %v808
        %v937 = vsub.f32 %v873, %v809
        %v938 = vsub.f32 %v874, %v810
        %v939 = vsub.f32 %v875, %v811
        %v940 = vsub.f32 %v876, %v812
        %v941 = vsub.f32 %v877, %v813
        %v942 = vsub.f32 %v878, %v814
        %v943 = vsub.f32 %v879, %v815
        %v944 = vsub.f32 %v880, %v816
        %v945 = vsub.f32 %v881, %v817
        %v946 = vsub.f32 %v882, %v818
        %v947 = vsub.f32 %v883, %v819
        %v948 = vsub.f32 %v884, %v820
        %v949 = vsub.f32 %v885, %v821
        %v950 = vsub.f32 %v886, %v822
        %v951 = vsub.f32 %v887, %v823
        %v952 = vsub.f32 %v888, %v824
        %v953 = vsub.f32 %v889, %v825
        %v954 = vsub.f32 %v890, %v826
        %v955 = vsub.f32 %v891, %v827
        %v956 = vsub.f32 %v892, %v828
        %v957 = vsub.f32 %v893, %v829
        %v958 = vsub.f32 %v894, %v830
        %v959 = vmul.f32 %v895, %v895
        %v960 = vmul.f32 %v896, %v896
        %v961 = vmul.f32 %v897, %v897
        %v962 = vmul.f32 %v898, %v898
        %v963 = vmul.f32 %v899, %v899
        %v964 = vmul.f32 %v900, %v900
        %v965 = vmul.f32 %v901, %v901
        %v966 = vmul.f32 %v902, %v902
        %v967 = vmul.f32 %v903, %v903
        %v968 = vmul.f32 %v904, %v904
        %v969 = vmul.f32 %v905, %v905
        %v970 = vmul.f32 %v906, %v906
        %v971 = vmul.f32 %v907, %v907
        %v972 = vmul.f32 %v908, %v908
        %v973 = vmul.f32 %v909, %v909
        %v974 = vmul.f32 %v910, %v910
        %v975 = vmul.f32 %v911, %v911
        %v976 = vmul.f32 %v912, %v912
        %v977 = vmul.f32 %v913, %v913
        %v978 = vmul.f32 %v914, %v914
        %v979 = vmul.f32 %v915, %v915
        %v980 = vmul.f32 %v916, %v916
        %v981 = vmul.f32 %v917, %v917
        %v982 = vmul.f32 %v918, %v918
        %v983 = vmul.f32 %v919, %v919
        %v984 = vmul.f32 %v920, %v920
        %v985 = vmul.f32 %v921, %v921
        %v986 = vmul.f32 %v922, %v922
        %v987 = vmul.f32 %v923, %v923
        %v988 = vmul.f32 %v924, %v924
        %v989 = vmul.f32 %v925, %v925
        %v990 = vmul.f32 %v926, %v926
        %v991 = vmul.f32 %v927, %v927
        %v992 = vmul.f32 %v928, %v928
        %v993 = vmul.f32 %v929, %v929
        %v994 = vmul.f32 %v930, %v930
        %v995 = vmul.f32 %v931, %v931
        %v996 = vmul.f32 %v932, %v932
        %v997 = vmul.f32 %v933, %v933
        %v998 = vmul.f32 %v934, %v934
        %v999 = vmul.f32 %v935, %v935
        %v1000 = vmul.f32 %v936, %v936
        %v1001 = vmul.f32 %v937, %v937
        %v1002 = vmul.f32 %v938, %v938
        %v1003 = vmul.f32 %v939, %v939
        %v1004 = vmul.f32 %v940, %v940
        %v1005 = vmul.f32 %v941, %v941
        %v1006 = vmul.f32 %v942, %v942
        %v1007 = vmul.f32 %v943, %v943
        %v1008 = vmul.f32 %v944, %v944
        %v1009 = vmul.f32 %v945, %v945
        %v1010 = vmul.f32 %v946, %v946
        %v1011 = vmul.f32 %v947, %v947
        %v1012 = vmul.f32 %v948, %v948
        %v1013 = vmul.f32 %v949, %v949
        %v1014 = vmul.f32 %v950, %v950
        %v1015 = vmul.f32 %v951, %v951
        %v1016 = vmul.f32 %v952, %v952
        %v1017 = vmul.f32 %v953, %v953
        %v1018 = vmul.f32 %v954, %v954
        %v1019 = vmul.f32 %v955, %v955
        %v1020 = vmul.f32 %v956, %v956
        %v1021 = vmul.f32 %v957, %v957
        %v1022 = vmul.f32 %v958, %v958
        %v1023 = vtanh.pop %v831
        %v1024 = vtanh.pop %v832
        %v1025 = vtanh.pop %v833
        %v1026 = vtanh.pop %v834
        %v1027 = vtanh.pop %v835
        %v1028 = vtanh.pop %v836
        %v1029 = vtanh.pop %v837
        %v1030 = vtanh.pop %v838
        %v1031 = vtanh.pop %v839
        %v1032 = vtanh.pop %v840
        %v1033 = vtanh.pop %v841
        %v1034 = vtanh.pop %v842
        %v1035 = vtanh.pop %v843
        %v1036 = vtanh.pop %v844
        %v1037 = vtanh.pop %v845
        %v1038 = vtanh.pop %v846
        %v1039 = vtanh.pop %v847
        %v1040 = vtanh.pop %v848
        %v1041 = vtanh.pop %v849
        %v1042 = vtanh.pop %v850
        %v1043 = vtanh.pop %v851
        %v1044 = vtanh.pop %v852
        %v1045 = vtanh.pop %v853
        %v1046 = vtanh.pop %v854
        %v1047 = vtanh.pop %v855
        %v1048 = vtanh.pop %v856
        %v1049 = vtanh.pop %v857
        %v1050 = vtanh.pop %v858
        %v1051 = vtanh.pop %v859
        %v1052 = vtanh.pop %v860
        %v1053 = vtanh.pop %v861
        %v1054 = vtanh.pop %v862
        %v1055 = vtanh.pop %v863
        %v1056 = vtanh.pop %v864
        %v1057 = vtanh.pop %v865
        %v1058 = vtanh.pop %v866
        %v1059 = vtanh.pop %v867
        %v1060 = vtanh.pop %v868
        %v1061 = vtanh.pop %v869
        %v1062 = vtanh.pop %v870
        %v1063 = vtanh.pop %v871
        %v1064 = vtanh.pop %v872
        %v1065 = vtanh.pop %v873
        %v1066 = vtanh.pop %v874
        %v1067 = vtanh.pop %v875
        %v1068 = vtanh.pop %v876
        %v1069 = vtanh.pop %v877
        %v1070 = vtanh.pop %v878
        %v1071 = vtanh.pop %v879
        %v1072 = vtanh.pop %v880
        %v1073 = vtanh.pop %v881
        %v1074 = vtanh.pop %v882
        %v1075 = vtanh.pop %v883
        %v1076 = vtanh.pop %v884
        %v1077 = vtanh.pop %v885
        %v1078 = vtanh.pop %v886
        %v1079 = vtanh.pop %v887
        %v1080 = vtanh.pop %v888
        %v1081 = vtanh.pop %v889
        %v1082 = vtanh.pop %v890
        %v1083 = vtanh.pop %v891
        %v1084 = vtanh.pop %v892
        %v1085 = vtanh.pop %v893
        %v1086 = vtanh.pop %v894
        %v1087 = vadd.f32 %v1023, 0.05
        %v1088 = vadd.f32 %v1024, 0.05
        %v1089 = vadd.f32 %v1025, 0.05
        %v1090 = vadd.f32 %v1026, 0.05
        %v1091 = vadd.f32 %v1027, 0.05
        %v1092 = vadd.f32 %v1028, 0.05
        %v1093 = vadd.f32 %v1029, 0.05
        %v1094 = vadd.f32 %v1030, 0.05
        %v1095 = vadd.f32 %v1031, 0.05
        %v1096 = vadd.f32 %v1032, 0.05
        %v1097 = vadd.f32 %v1033, 0.05
        %v1098 = vadd.f32 %v1034, 0.05
        %v1099 = vadd.f32 %v1035, 0.05
        %v1100 = vadd.f32 %v1036, 0.05
        %v1101 = vadd.f32 %v1037, 0.05
        %v1102 = vadd.f32 %v1038, 0.05
        %v1103 = vadd.f32 %v1039, 0.05
        %v1104 = vadd.f32 %v1040, 0.05
        %v1105 = vadd.f32 %v1041, 0.05
        %v1106 = vadd.f32 %v1042, 0.05
        %v1107 = vadd.f32 %v1043, 0.05
        %v1108 = vadd.f32 %v1044, 0.05
        %v1109 = vadd.f32 %v1045, 0.05
        %v1110 = vadd.f32 %v1046, 0.05
        %v1111 = vadd.f32 %v1047, 0.05
        %v1112 = vadd.f32 %v1048, 0.05
        %v1113 = vadd.f32 %v1049, 0.05
        %v1114 = vadd.f32 %v1050, 0.05
        %v1115 = vadd.f32 %v1051, 0.05
        %v1116 = vadd.f32 %v1052, 0.05
        %v1117 = vadd.f32 %v1053, 0.05
        %v1118 = vadd.f32 %v1054, 0.05
        %v1119 = vadd.f32 %v1055, 0.05
        %v1120 = vadd.f32 %v1056, 0.05
        %v1121 = vadd.f32 %v1057, 0.05
        %v1122 = vadd.f32 %v1058, 0.05
        %v1123 = vadd.f32 %v1059, 0.05
        %v1124 = vadd.f32 %v1060, 0.05
        %v1125 = vadd.f32 %v1061, 0.05
        %v1126 = vadd.f32 %v1062, 0.05
        %v1127 = vadd.f32 %v1063, 0.05
        %v1128 = vadd.f32 %v1064, 0.05
        %v1129 = vadd.f32 %v1065, 0.05
        %v1130 = vadd.f32 %v1066, 0.05
        %v1131 = vadd.f32 %v1067, 0.05
        %v1132 = vadd.f32 %v1068, 0.05
        %v1133 = vadd.f32 %v1069, 0.05
        %v1134 = vadd.f32 %v1070, 0.05
        %v1135 = vadd.f32 %v1071, 0.05
        %v1136 = vadd.f32 %v1072, 0.05
        %v1137 = vadd.f32 %v1073, 0.05
        %v1138 = vadd.f32 %v1074, 0.05
        %v1139 = vadd.f32 %v1075, 0.05
        %v1140 = vadd.f32 %v1076, 0.05
        %v1141 = vadd.f32 %v1077, 0.05
        %v1142 = vadd.f32 %v1078, 0.05
        %v1143 = vadd.f32 %v1079, 0.05
        %v1144 = vadd.f32 %v1080, 0.05
        %v1145 = vadd.f32 %v1081, 0.05
        %v1146 = vadd.f32 %v1082, 0.05
        %v1147 = vadd.f32 %v1083, 0.05
        %v1148 = vadd.f32 %v1084, 0.05
        %v1149 = vadd.f32 %v1085, 0.05
        %v1150 = vadd.f32 %v1086, 0.05
        %v1151 = vmul.f32 %v959, %v1087
        %v1152 = vmul.f32 %v960, %v1088
        %v1153 = vmul.f32 %v961, %v1089
        %v1154 = vmul.f32 %v962, %v1090
        %v1155 = vmul.f32 %v963, %v1091
        %v1156 = vmul.f32 %v964, %v1092
        %v1157 = vmul.f32 %v965, %v1093
        %v1158 = vmul.f32 %v966, %v1094
        %v1159 = vmul.f32 %v967, %v1095
        %v1160 = vmul.f32 %v968, %v1096
        %v1161 = vmul.f32 %v969, %v1097
        %v1162 = vmul.f32 %v970, %v1098
        %v1163 = vmul.f32 %v971, %v1099
        %v1164 = vmul.f32 %v972, %v1100
        %v1165 = vmul.f32 %v973, %v1101
        %v1166 = vmul.f32 %v974, %v1102
        %v1167 = vmul.f32 %v975, %v1103
        %v1168 = vmul.f32 %v976, %v1104
        %v1169 = vmul.f32 %v977, %v1105
        %v1170 = vmul.f32 %v978, %v1106
        %v1171 = vmul.f32 %v979, %v1107
        %v1172 = vmul.f32 %v980, %v1108
        %v1173 = vmul.f32 %v981, %v1109
        %v1174 = vmul.f32 %v982, %v1110
        %v1175 = vmul.f32 %v983, %v1111
        %v1176 = vmul.f32 %v984, %v1112
        %v1177 = vmul.f32 %v985, %v1113
        %v1178 = vmul.f32 %v986, %v1114
        %v1179 = vmul.f32 %v987, %v1115
        %v1180 = vmul.f32 %v988, %v1116
        %v1181 = vmul.f32 %v989, %v1117
        %v1182 = vmul.f32 %v990, %v1118
        %v1183 = vmul.f32 %v991, %v1119
        %v1184 = vmul.f32 %v992, %v1120
        %v1185 = vmul.f32 %v993, %v1121
        %v1186 = vmul.f32 %v994, %v1122
        %v1187 = vmul.f32 %v995, %v1123
        %v1188 = vmul.f32 %v996, %v1124
        %v1189 = vmul.f32 %v997, %v1125
        %v1190 = vmul.f32 %v998, %v1126
        %v1191 = vmul.f32 %v999, %v1127
        %v1192 = vmul.f32 %v1000, %v1128
        %v1193 = vmul.f32 %v1001, %v1129
        %v1194 = vmul.f32 %v1002, %v1130
        %v1195 = vmul.f32 %v1003, %v1131
        %v1196 = vmul.f32 %v1004, %v1132
        %v1197 = vmul.f32 %v1005, %v1133
        %v1198 = vmul.f32 %v1006, %v1134
        %v1199 = vmul.f32 %v1007, %v1135
        %v1200 = vmul.f32 %v1008, %v1136
        %v1201 = vmul.f32 %v1009, %v1137
        %v1202 = vmul.f32 %v1010, %v1138
        %v1203 = vmul.f32 %v1011, %v1139
        %v1204 = vmul.f32 %v1012, %v1140
        %v1205 = vmul.f32 %v1013, %v1141
        %v1206 = vmul.f32 %v1014, %v1142
        %v1207 = vmul.f32 %v1015, %v1143
        %v1208 = vmul.f32 %v1016, %v1144
        %v1209 = vmul.f32 %v1017, %v1145
        %v1210 = vmul.f32 %v1018, %v1146
        %v1211 = vmul.f32 %v1019, %v1147
        %v1212 = vmul.f32 %v1020, %v1148
        %v1213 = vmul.f32 %v1021, %v1149
        %v1214 = vmul.f32 %v1022, %v1150
        %v1215 = vld [vmem:[%s237] sm:$0xff]
        %v1216 = vadd.f32 %v1151, %v1152
        %v1217 = vadd.f32 %v1216, %v1153
        %v1218 = vadd.f32 %v1217, %v1154
        %v1219 = vadd.f32 %v1218, %v1155
        %v1220 = vadd.f32 %v1219, %v1156
        %v1221 = vadd.f32 %v1220, %v1157
        %v1222 = vadd.f32 %v1221, %v1158
        %v1223 = vadd.f32 %v1222, %v1159
        %v1224 = vadd.f32 %v1223, %v1160
        %v1225 = vadd.f32 %v1224, %v1161
        %v1226 = vadd.f32 %v1225, %v1162
        %v1227 = vadd.f32 %v1226, %v1163
        %v1228 = vadd.f32 %v1227, %v1164
        %v1229 = vadd.f32 %v1228, %v1165
        %v1230 = vadd.f32 %v1229, %v1166
        %v1231 = vadd.f32 %v1230, %v1167
        %v1232 = vadd.f32 %v1231, %v1168
        %v1233 = vadd.f32 %v1232, %v1169
        %v1234 = vadd.f32 %v1233, %v1170
        %v1235 = vadd.f32 %v1234, %v1171
        %v1236 = vadd.f32 %v1235, %v1172
        %v1237 = vadd.f32 %v1236, %v1173
        %v1238 = vadd.f32 %v1237, %v1174
        %v1239 = vadd.f32 %v1238, %v1175
        %v1240 = vadd.f32 %v1239, %v1176
        %v1241 = vadd.f32 %v1240, %v1177
        %v1242 = vadd.f32 %v1241, %v1178
        %v1243 = vadd.f32 %v1242, %v1179
        %v1244 = vadd.f32 %v1243, %v1180
        %v1245 = vadd.f32 %v1244, %v1181
        %v1246 = vadd.f32 %v1245, %v1182
        %v1247 = vadd.f32 %v1246, %v1183
        %v1248 = vadd.f32 %v1247, %v1184
        %v1249 = vadd.f32 %v1248, %v1185
        %v1250 = vadd.f32 %v1249, %v1186
        %v1251 = vadd.f32 %v1250, %v1187
        %v1252 = vadd.f32 %v1251, %v1188
        %v1253 = vadd.f32 %v1252, %v1189
        %v1254 = vadd.f32 %v1253, %v1190
        %v1255 = vadd.f32 %v1254, %v1191
        %v1256 = vadd.f32 %v1255, %v1192
        %v1257 = vadd.f32 %v1256, %v1193
        %v1258 = vadd.f32 %v1257, %v1194
        %v1259 = vadd.f32 %v1258, %v1195
        %v1260 = vadd.f32 %v1259, %v1196
        %v1261 = vadd.f32 %v1260, %v1197
        %v1262 = vadd.f32 %v1261, %v1198
        %v1263 = vadd.f32 %v1262, %v1199
        %v1264 = vadd.f32 %v1263, %v1200
        %v1265 = vadd.f32 %v1264, %v1201
        %v1266 = vadd.f32 %v1265, %v1202
        %v1267 = vadd.f32 %v1266, %v1203
        %v1268 = vadd.f32 %v1267, %v1204
        %v1269 = vadd.f32 %v1268, %v1205
        %v1270 = vadd.f32 %v1269, %v1206
        %v1271 = vadd.f32 %v1270, %v1207
        %v1272 = vadd.f32 %v1271, %v1208
        %v1273 = vadd.f32 %v1272, %v1209
        %v1274 = vadd.f32 %v1273, %v1210
        %v1275 = vadd.f32 %v1274, %v1211
        %v1276 = vadd.f32 %v1275, %v1212
        %v1277 = vadd.f32 %v1276, %v1213
        %v1278 = vadd.f32 %v1277, %v1214
        %v1279 = vadd.f32 %v1215, %v1278
        %1280 = vst [vmem:[%s237] sm:$0xff] %v1279
        %v1281 = vld [vmem:[%s203 + $0x400] sm:$0xff]
        %v1282 = vld [vmem:[%s203 + $0x408] sm:$0xff]
        %v1283 = vld [vmem:[%s203 + $0x410] sm:$0xff]
        %v1284 = vld [vmem:[%s203 + $0x418] sm:$0xff]
        %v1285 = vld [vmem:[%s203 + $0x420] sm:$0xff]
        %v1286 = vld [vmem:[%s203 + $0x428] sm:$0xff]
        %v1287 = vld [vmem:[%s203 + $0x430] sm:$0xff]
        %v1288 = vld [vmem:[%s203 + $0x438] sm:$0xff]
        %v1289 = vld [vmem:[%s203 + $0x440] sm:$0xff]
        %v1290 = vld [vmem:[%s203 + $0x448] sm:$0xff]
        %v1291 = vld [vmem:[%s203 + $0x450] sm:$0xff]
        %v1292 = vld [vmem:[%s203 + $0x458] sm:$0xff]
        %v1293 = vld [vmem:[%s203 + $0x460] sm:$0xff]
        %v1294 = vld [vmem:[%s203 + $0x468] sm:$0xff]
        %v1295 = vld [vmem:[%s203 + $0x470] sm:$0xff]
        %v1296 = vld [vmem:[%s203 + $0x478] sm:$0xff]
        %v1297 = vld [vmem:[%s203 + $0x480] sm:$0xff]
        %v1298 = vld [vmem:[%s203 + $0x488] sm:$0xff]
        %v1299 = vld [vmem:[%s203 + $0x490] sm:$0xff]
        %v1300 = vld [vmem:[%s203 + $0x498] sm:$0xff]
        %v1301 = vld [vmem:[%s203 + $0x4a0] sm:$0xff]
        %v1302 = vld [vmem:[%s203 + $0x4a8] sm:$0xff]
        %v1303 = vld [vmem:[%s203 + $0x4b0] sm:$0xff]
        %v1304 = vld [vmem:[%s203 + $0x4b8] sm:$0xff]
        %v1305 = vld [vmem:[%s203 + $0x4c0] sm:$0xff]
        %v1306 = vld [vmem:[%s203 + $0x4c8] sm:$0xff]
        %v1307 = vld [vmem:[%s203 + $0x4d0] sm:$0xff]
        %v1308 = vld [vmem:[%s203 + $0x4d8] sm:$0xff]
        %v1309 = vld [vmem:[%s203 + $0x4e0] sm:$0xff]
        %v1310 = vld [vmem:[%s203 + $0x4e8] sm:$0xff]
        %v1311 = vld [vmem:[%s203 + $0x4f0] sm:$0xff]
        %v1312 = vld [vmem:[%s203 + $0x4f8] sm:$0xff]
        %v1313 = vld [vmem:[%s203 + $0x500] sm:$0xff]
        %v1314 = vld [vmem:[%s203 + $0x508] sm:$0xff]
        %v1315 = vld [vmem:[%s203 + $0x510] sm:$0xff]
        %v1316 = vld [vmem:[%s203 + $0x518] sm:$0xff]
        %v1317 = vld [vmem:[%s203 + $0x520] sm:$0xff]
        %v1318 = vld [vmem:[%s203 + $0x528] sm:$0xff]
        %v1319 = vld [vmem:[%s203 + $0x530] sm:$0xff]
        %v1320 = vld [vmem:[%s203 + $0x538] sm:$0xff]
        %v1321 = vld [vmem:[%s203 + $0x540] sm:$0xff]
        %v1322 = vld [vmem:[%s203 + $0x548] sm:$0xff]
        %v1323 = vld [vmem:[%s203 + $0x550] sm:$0xff]
        %v1324 = vld [vmem:[%s203 + $0x558] sm:$0xff]
        %v1325 = vld [vmem:[%s203 + $0x560] sm:$0xff]
        %v1326 = vld [vmem:[%s203 + $0x568] sm:$0xff]
        %v1327 = vld [vmem:[%s203 + $0x570] sm:$0xff]
        %v1328 = vld [vmem:[%s203 + $0x578] sm:$0xff]
        %v1329 = vld [vmem:[%s203 + $0x580] sm:$0xff]
        %v1330 = vld [vmem:[%s203 + $0x588] sm:$0xff]
        %v1331 = vld [vmem:[%s203 + $0x590] sm:$0xff]
        %v1332 = vld [vmem:[%s203 + $0x598] sm:$0xff]
        %v1333 = vld [vmem:[%s203 + $0x5a0] sm:$0xff]
        %v1334 = vld [vmem:[%s203 + $0x5a8] sm:$0xff]
        %v1335 = vld [vmem:[%s203 + $0x5b0] sm:$0xff]
        %v1336 = vld [vmem:[%s203 + $0x5b8] sm:$0xff]
        %v1337 = vld [vmem:[%s203 + $0x5c0] sm:$0xff]
        %v1338 = vld [vmem:[%s203 + $0x5c8] sm:$0xff]
        %v1339 = vld [vmem:[%s203 + $0x5d0] sm:$0xff]
        %v1340 = vld [vmem:[%s203 + $0x5d8] sm:$0xff]
        %v1341 = vld [vmem:[%s203 + $0x5e0] sm:$0xff]
        %v1342 = vld [vmem:[%s203 + $0x5e8] sm:$0xff]
        %v1343 = vld [vmem:[%s203 + $0x5f0] sm:$0xff]
        %v1344 = vld [vmem:[%s203 + $0x5f8] sm:$0xff]
        %v1345 = vld [vmem:[%s212 + $0x400] sm:$0xff]
        %v1346 = vld [vmem:[%s212 + $0x408] sm:$0xff]
        %v1347 = vld [vmem:[%s212 + $0x410] sm:$0xff]
        %v1348 = vld [vmem:[%s212 + $0x418] sm:$0xff]
        %v1349 = vld [vmem:[%s212 + $0x420] sm:$0xff]
        %v1350 = vld [vmem:[%s212 + $0x428] sm:$0xff]
        %v1351 = vld [vmem:[%s212 + $0x430] sm:$0xff]
        %v1352 = vld [vmem:[%s212 + $0x438] sm:$0xff]
        %v1353 = vld [vmem:[%s212 + $0x440] sm:$0xff]
        %v1354 = vld [vmem:[%s212 + $0x448] sm:$0xff]
        %v1355 = vld [vmem:[%s212 + $0x450] sm:$0xff]
        %v1356 = vld [vmem:[%s212 + $0x458] sm:$0xff]
        %v1357 = vld [vmem:[%s212 + $0x460] sm:$0xff]
        %v1358 = vld [vmem:[%s212 + $0x468] sm:$0xff]
        %v1359 = vld [vmem:[%s212 + $0x470] sm:$0xff]
        %v1360 = vld [vmem:[%s212 + $0x478] sm:$0xff]
        %v1361 = vld [vmem:[%s212 + $0x480] sm:$0xff]
        %v1362 = vld [vmem:[%s212 + $0x488] sm:$0xff]
        %v1363 = vld [vmem:[%s212 + $0x490] sm:$0xff]
        %v1364 = vld [vmem:[%s212 + $0x498] sm:$0xff]
        %v1365 = vld [vmem:[%s212 + $0x4a0] sm:$0xff]
        %v1366 = vld [vmem:[%s212 + $0x4a8] sm:$0xff]
        %v1367 = vld [vmem:[%s212 + $0x4b0] sm:$0xff]
        %v1368 = vld [vmem:[%s212 + $0x4b8] sm:$0xff]
        %v1369 = vld [vmem:[%s212 + $0x4c0] sm:$0xff]
        %v1370 = vld [vmem:[%s212 + $0x4c8] sm:$0xff]
        %v1371 = vld [vmem:[%s212 + $0x4d0] sm:$0xff]
        %v1372 = vld [vmem:[%s212 + $0x4d8] sm:$0xff]
        %v1373 = vld [vmem:[%s212 + $0x4e0] sm:$0xff]
        %v1374 = vld [vmem:[%s212 + $0x4e8] sm:$0xff]
        %v1375 = vld [vmem:[%s212 + $0x4f0] sm:$0xff]
        %v1376 = vld [vmem:[%s212 + $0x4f8] sm:$0xff]
        %v1377 = vld [vmem:[%s212 + $0x500] sm:$0xff]
        %v1378 = vld [vmem:[%s212 + $0x508] sm:$0xff]
        %v1379 = vld [vmem:[%s212 + $0x510] sm:$0xff]
        %v1380 = vld [vmem:[%s212 + $0x518] sm:$0xff]
        %v1381 = vld [vmem:[%s212 + $0x520] sm:$0xff]
        %v1382 = vld [vmem:[%s212 + $0x528] sm:$0xff]
        %v1383 = vld [vmem:[%s212 + $0x530] sm:$0xff]
        %v1384 = vld [vmem:[%s212 + $0x538] sm:$0xff]
        %v1385 = vld [vmem:[%s212 + $0x540] sm:$0xff]
        %v1386 = vld [vmem:[%s212 + $0x548] sm:$0xff]
        %v1387 = vld [vmem:[%s212 + $0x550] sm:$0xff]
        %v1388 = vld [vmem:[%s212 + $0x558] sm:$0xff]
        %v1389 = vld [vmem:[%s212 + $0x560] sm:$0xff]
        %v1390 = vld [vmem:[%s212 + $0x568] sm:$0xff]
        %v1391 = vld [vmem:[%s212 + $0x570] sm:$0xff]
        %v1392 = vld [vmem:[%s212 + $0x578] sm:$0xff]
        %v1393 = vld [vmem:[%s212 + $0x580] sm:$0xff]
        %v1394 = vld [vmem:[%s212 + $0x588] sm:$0xff]
        %v1395 = vld [vmem:[%s212 + $0x590] sm:$0xff]
        %v1396 = vld [vmem:[%s212 + $0x598] sm:$0xff]
        %v1397 = vld [vmem:[%s212 + $0x5a0] sm:$0xff]
        %v1398 = vld [vmem:[%s212 + $0x5a8] sm:$0xff]
        %v1399 = vld [vmem:[%s212 + $0x5b0] sm:$0xff]
        %v1400 = vld [vmem:[%s212 + $0x5b8] sm:$0xff]
        %v1401 = vld [vmem:[%s212 + $0x5c0] sm:$0xff]
        %v1402 = vld [vmem:[%s212 + $0x5c8] sm:$0xff]
        %v1403 = vld [vmem:[%s212 + $0x5d0] sm:$0xff]
        %v1404 = vld [vmem:[%s212 + $0x5d8] sm:$0xff]
        %v1405 = vld [vmem:[%s212 + $0x5e0] sm:$0xff]
        %v1406 = vld [vmem:[%s212 + $0x5e8] sm:$0xff]
        %v1407 = vld [vmem:[%s212 + $0x5f0] sm:$0xff]
        %v1408 = vld [vmem:[%s212 + $0x5f8] sm:$0xff]
        %v1409 = vsub.f32 %v1345, %v1281
        %v1410 = vsub.f32 %v1346, %v1282
        %v1411 = vsub.f32 %v1347, %v1283
        %v1412 = vsub.f32 %v1348, %v1284
        %v1413 = vsub.f32 %v1349, %v1285
        %v1414 = vsub.f32 %v1350, %v1286
        %v1415 = vsub.f32 %v1351, %v1287
        %v1416 = vsub.f32 %v1352, %v1288
        %v1417 = vsub.f32 %v1353, %v1289
        %v1418 = vsub.f32 %v1354, %v1290
        %v1419 = vsub.f32 %v1355, %v1291
        %v1420 = vsub.f32 %v1356, %v1292
        %v1421 = vsub.f32 %v1357, %v1293
        %v1422 = vsub.f32 %v1358, %v1294
        %v1423 = vsub.f32 %v1359, %v1295
        %v1424 = vsub.f32 %v1360, %v1296
        %v1425 = vsub.f32 %v1361, %v1297
        %v1426 = vsub.f32 %v1362, %v1298
        %v1427 = vsub.f32 %v1363, %v1299
        %v1428 = vsub.f32 %v1364, %v1300
        %v1429 = vsub.f32 %v1365, %v1301
        %v1430 = vsub.f32 %v1366, %v1302
        %v1431 = vsub.f32 %v1367, %v1303
        %v1432 = vsub.f32 %v1368, %v1304
        %v1433 = vsub.f32 %v1369, %v1305
        %v1434 = vsub.f32 %v1370, %v1306
        %v1435 = vsub.f32 %v1371, %v1307
        %v1436 = vsub.f32 %v1372, %v1308
        %v1437 = vsub.f32 %v1373, %v1309
        %v1438 = vsub.f32 %v1374, %v1310
        %v1439 = vsub.f32 %v1375, %v1311
        %v1440 = vsub.f32 %v1376, %v1312
        %v1441 = vsub.f32 %v1377, %v1313
        %v1442 = vsub.f32 %v1378, %v1314
        %v1443 = vsub.f32 %v1379, %v1315
        %v1444 = vsub.f32 %v1380, %v1316
        %v1445 = vsub.f32 %v1381, %v1317
        %v1446 = vsub.f32 %v1382, %v1318
        %v1447 = vsub.f32 %v1383, %v1319
        %v1448 = vsub.f32 %v1384, %v1320
        %v1449 = vsub.f32 %v1385, %v1321
        %v1450 = vsub.f32 %v1386, %v1322
        %v1451 = vsub.f32 %v1387, %v1323
        %v1452 = vsub.f32 %v1388, %v1324
        %v1453 = vsub.f32 %v1389, %v1325
        %v1454 = vsub.f32 %v1390, %v1326
        %v1455 = vsub.f32 %v1391, %v1327
        %v1456 = vsub.f32 %v1392, %v1328
        %v1457 = vsub.f32 %v1393, %v1329
        %v1458 = vsub.f32 %v1394, %v1330
        %v1459 = vsub.f32 %v1395, %v1331
        %v1460 = vsub.f32 %v1396, %v1332
        %v1461 = vsub.f32 %v1397, %v1333
        %v1462 = vsub.f32 %v1398, %v1334
        %v1463 = vsub.f32 %v1399, %v1335
        %v1464 = vsub.f32 %v1400, %v1336
        %v1465 = vsub.f32 %v1401, %v1337
        %v1466 = vsub.f32 %v1402, %v1338
        %v1467 = vsub.f32 %v1403, %v1339
        %v1468 = vsub.f32 %v1404, %v1340
        %v1469 = vsub.f32 %v1405, %v1341
        %v1470 = vsub.f32 %v1406, %v1342
        %v1471 = vsub.f32 %v1407, %v1343
        %v1472 = vsub.f32 %v1408, %v1344
        %v1473 = vmul.f32 %v1409, %v1409
        %v1474 = vmul.f32 %v1410, %v1410
        %v1475 = vmul.f32 %v1411, %v1411
        %v1476 = vmul.f32 %v1412, %v1412
        %v1477 = vmul.f32 %v1413, %v1413
        %v1478 = vmul.f32 %v1414, %v1414
        %v1479 = vmul.f32 %v1415, %v1415
        %v1480 = vmul.f32 %v1416, %v1416
        %v1481 = vmul.f32 %v1417, %v1417
        %v1482 = vmul.f32 %v1418, %v1418
        %v1483 = vmul.f32 %v1419, %v1419
        %v1484 = vmul.f32 %v1420, %v1420
        %v1485 = vmul.f32 %v1421, %v1421
        %v1486 = vmul.f32 %v1422, %v1422
        %v1487 = vmul.f32 %v1423, %v1423
        %v1488 = vmul.f32 %v1424, %v1424
        %v1489 = vmul.f32 %v1425, %v1425
        %v1490 = vmul.f32 %v1426, %v1426
        %v1491 = vmul.f32 %v1427, %v1427
        %v1492 = vmul.f32 %v1428, %v1428
        %v1493 = vmul.f32 %v1429, %v1429
        %v1494 = vmul.f32 %v1430, %v1430
        %v1495 = vmul.f32 %v1431, %v1431
        %v1496 = vmul.f32 %v1432, %v1432
        %v1497 = vmul.f32 %v1433, %v1433
        %v1498 = vmul.f32 %v1434, %v1434
        %v1499 = vmul.f32 %v1435, %v1435
        %v1500 = vmul.f32 %v1436, %v1436
        %v1501 = vmul.f32 %v1437, %v1437
        %v1502 = vmul.f32 %v1438, %v1438
        %v1503 = vmul.f32 %v1439, %v1439
        %v1504 = vmul.f32 %v1440, %v1440
        %v1505 = vmul.f32 %v1441, %v1441
        %v1506 = vmul.f32 %v1442, %v1442
        %v1507 = vmul.f32 %v1443, %v1443
        %v1508 = vmul.f32 %v1444, %v1444
        %v1509 = vmul.f32 %v1445, %v1445
        %v1510 = vmul.f32 %v1446, %v1446
        %v1511 = vmul.f32 %v1447, %v1447
        %v1512 = vmul.f32 %v1448, %v1448
        %v1513 = vmul.f32 %v1449, %v1449
        %v1514 = vmul.f32 %v1450, %v1450
        %v1515 = vmul.f32 %v1451, %v1451
        %v1516 = vmul.f32 %v1452, %v1452
        %v1517 = vmul.f32 %v1453, %v1453
        %v1518 = vmul.f32 %v1454, %v1454
        %v1519 = vmul.f32 %v1455, %v1455
        %v1520 = vmul.f32 %v1456, %v1456
        %v1521 = vmul.f32 %v1457, %v1457
        %v1522 = vmul.f32 %v1458, %v1458
        %v1523 = vmul.f32 %v1459, %v1459
        %v1524 = vmul.f32 %v1460, %v1460
        %v1525 = vmul.f32 %v1461, %v1461
        %v1526 = vmul.f32 %v1462, %v1462
        %v1527 = vmul.f32 %v1463, %v1463
        %v1528 = vmul.f32 %v1464, %v1464
        %v1529 = vmul.f32 %v1465, %v1465
        %v1530 = vmul.f32 %v1466, %v1466
        %v1531 = vmul.f32 %v1467, %v1467
        %v1532 = vmul.f32 %v1468, %v1468
        %v1533 = vmul.f32 %v1469, %v1469
        %v1534 = vmul.f32 %v1470, %v1470
        %v1535 = vmul.f32 %v1471, %v1471
        %v1536 = vmul.f32 %v1472, %v1472
        %v1537 = vtanh.pop %v1345
        %v1538 = vtanh.pop %v1346
        %v1539 = vtanh.pop %v1347
        %v1540 = vtanh.pop %v1348
        %v1541 = vtanh.pop %v1349
        %v1542 = vtanh.pop %v1350
        %v1543 = vtanh.pop %v1351
        %v1544 = vtanh.pop %v1352
        %v1545 = vtanh.pop %v1353
        %v1546 = vtanh.pop %v1354
        %v1547 = vtanh.pop %v1355
        %v1548 = vtanh.pop %v1356
        %v1549 = vtanh.pop %v1357
        %v1550 = vtanh.pop %v1358
        %v1551 = vtanh.pop %v1359
        %v1552 = vtanh.pop %v1360
        %v1553 = vtanh.pop %v1361
        %v1554 = vtanh.pop %v1362
        %v1555 = vtanh.pop %v1363
        %v1556 = vtanh.pop %v1364
        %v1557 = vtanh.pop %v1365
        %v1558 = vtanh.pop %v1366
        %v1559 = vtanh.pop %v1367
        %v1560 = vtanh.pop %v1368
        %v1561 = vtanh.pop %v1369
        %v1562 = vtanh.pop %v1370
        %v1563 = vtanh.pop %v1371
        %v1564 = vtanh.pop %v1372
        %v1565 = vtanh.pop %v1373
        %v1566 = vtanh.pop %v1374
        %v1567 = vtanh.pop %v1375
        %v1568 = vtanh.pop %v1376
        %v1569 = vtanh.pop %v1377
        %v1570 = vtanh.pop %v1378
        %v1571 = vtanh.pop %v1379
        %v1572 = vtanh.pop %v1380
        %v1573 = vtanh.pop %v1381
        %v1574 = vtanh.pop %v1382
        %v1575 = vtanh.pop %v1383
        %v1576 = vtanh.pop %v1384
        %v1577 = vtanh.pop %v1385
        %v1578 = vtanh.pop %v1386
        %v1579 = vtanh.pop %v1387
        %v1580 = vtanh.pop %v1388
        %v1581 = vtanh.pop %v1389
        %v1582 = vtanh.pop %v1390
        %v1583 = vtanh.pop %v1391
        %v1584 = vtanh.pop %v1392
        %v1585 = vtanh.pop %v1393
        %v1586 = vtanh.pop %v1394
        %v1587 = vtanh.pop %v1395
        %v1588 = vtanh.pop %v1396
        %v1589 = vtanh.pop %v1397
        %v1590 = vtanh.pop %v1398
        %v1591 = vtanh.pop %v1399
        %v1592 = vtanh.pop %v1400
        %v1593 = vtanh.pop %v1401
        %v1594 = vtanh.pop %v1402
        %v1595 = vtanh.pop %v1403
        %v1596 = vtanh.pop %v1404
        %v1597 = vtanh.pop %v1405
        %v1598 = vtanh.pop %v1406
        %v1599 = vtanh.pop %v1407
        %v1600 = vtanh.pop %v1408
        %v1601 = vadd.f32 %v1537, 0.05
        %v1602 = vadd.f32 %v1538, 0.05
        %v1603 = vadd.f32 %v1539, 0.05
        %v1604 = vadd.f32 %v1540, 0.05
        %v1605 = vadd.f32 %v1541, 0.05
        %v1606 = vadd.f32 %v1542, 0.05
        %v1607 = vadd.f32 %v1543, 0.05
        %v1608 = vadd.f32 %v1544, 0.05
        %v1609 = vadd.f32 %v1545, 0.05
        %v1610 = vadd.f32 %v1546, 0.05
        %v1611 = vadd.f32 %v1547, 0.05
        %v1612 = vadd.f32 %v1548, 0.05
        %v1613 = vadd.f32 %v1549, 0.05
        %v1614 = vadd.f32 %v1550, 0.05
        %v1615 = vadd.f32 %v1551, 0.05
        %v1616 = vadd.f32 %v1552, 0.05
        %v1617 = vadd.f32 %v1553, 0.05
        %v1618 = vadd.f32 %v1554, 0.05
        %v1619 = vadd.f32 %v1555, 0.05
        %v1620 = vadd.f32 %v1556, 0.05
        %v1621 = vadd.f32 %v1557, 0.05
        %v1622 = vadd.f32 %v1558, 0.05
        %v1623 = vadd.f32 %v1559, 0.05
        %v1624 = vadd.f32 %v1560, 0.05
        %v1625 = vadd.f32 %v1561, 0.05
        %v1626 = vadd.f32 %v1562, 0.05
        %v1627 = vadd.f32 %v1563, 0.05
        %v1628 = vadd.f32 %v1564, 0.05
        %v1629 = vadd.f32 %v1565, 0.05
        %v1630 = vadd.f32 %v1566, 0.05
        %v1631 = vadd.f32 %v1567, 0.05
        %v1632 = vadd.f32 %v1568, 0.05
        %v1633 = vadd.f32 %v1569, 0.05
        %v1634 = vadd.f32 %v1570, 0.05
        %v1635 = vadd.f32 %v1571, 0.05
        %v1636 = vadd.f32 %v1572, 0.05
        %v1637 = vadd.f32 %v1573, 0.05
        %v1638 = vadd.f32 %v1574, 0.05
        %v1639 = vadd.f32 %v1575, 0.05
        %v1640 = vadd.f32 %v1576, 0.05
        %v1641 = vadd.f32 %v1577, 0.05
        %v1642 = vadd.f32 %v1578, 0.05
        %v1643 = vadd.f32 %v1579, 0.05
        %v1644 = vadd.f32 %v1580, 0.05
        %v1645 = vadd.f32 %v1581, 0.05
        %v1646 = vadd.f32 %v1582, 0.05
        %v1647 = vadd.f32 %v1583, 0.05
        %v1648 = vadd.f32 %v1584, 0.05
        %v1649 = vadd.f32 %v1585, 0.05
        %v1650 = vadd.f32 %v1586, 0.05
        %v1651 = vadd.f32 %v1587, 0.05
        %v1652 = vadd.f32 %v1588, 0.05
        %v1653 = vadd.f32 %v1589, 0.05
        %v1654 = vadd.f32 %v1590, 0.05
        %v1655 = vadd.f32 %v1591, 0.05
        %v1656 = vadd.f32 %v1592, 0.05
        %v1657 = vadd.f32 %v1593, 0.05
        %v1658 = vadd.f32 %v1594, 0.05
        %v1659 = vadd.f32 %v1595, 0.05
        %v1660 = vadd.f32 %v1596, 0.05
        %v1661 = vadd.f32 %v1597, 0.05
        %v1662 = vadd.f32 %v1598, 0.05
        %v1663 = vadd.f32 %v1599, 0.05
        %v1664 = vadd.f32 %v1600, 0.05
        %v1665 = vmul.f32 %v1473, %v1601
        %v1666 = vmul.f32 %v1474, %v1602
        %v1667 = vmul.f32 %v1475, %v1603
        %v1668 = vmul.f32 %v1476, %v1604
        %v1669 = vmul.f32 %v1477, %v1605
        %v1670 = vmul.f32 %v1478, %v1606
        %v1671 = vmul.f32 %v1479, %v1607
        %v1672 = vmul.f32 %v1480, %v1608
        %v1673 = vmul.f32 %v1481, %v1609
        %v1674 = vmul.f32 %v1482, %v1610
        %v1675 = vmul.f32 %v1483, %v1611
        %v1676 = vmul.f32 %v1484, %v1612
        %v1677 = vmul.f32 %v1485, %v1613
        %v1678 = vmul.f32 %v1486, %v1614
        %v1679 = vmul.f32 %v1487, %v1615
        %v1680 = vmul.f32 %v1488, %v1616
        %v1681 = vmul.f32 %v1489, %v1617
        %v1682 = vmul.f32 %v1490, %v1618
        %v1683 = vmul.f32 %v1491, %v1619
        %v1684 = vmul.f32 %v1492, %v1620
        %v1685 = vmul.f32 %v1493, %v1621
        %v1686 = vmul.f32 %v1494, %v1622
        %v1687 = vmul.f32 %v1495, %v1623
        %v1688 = vmul.f32 %v1496, %v1624
        %v1689 = vmul.f32 %v1497, %v1625
        %v1690 = vmul.f32 %v1498, %v1626
        %v1691 = vmul.f32 %v1499, %v1627
        %v1692 = vmul.f32 %v1500, %v1628
        %v1693 = vmul.f32 %v1501, %v1629
        %v1694 = vmul.f32 %v1502, %v1630
        %v1695 = vmul.f32 %v1503, %v1631
        %v1696 = vmul.f32 %v1504, %v1632
        %v1697 = vmul.f32 %v1505, %v1633
        %v1698 = vmul.f32 %v1506, %v1634
        %v1699 = vmul.f32 %v1507, %v1635
        %v1700 = vmul.f32 %v1508, %v1636
        %v1701 = vmul.f32 %v1509, %v1637
        %v1702 = vmul.f32 %v1510, %v1638
        %v1703 = vmul.f32 %v1511, %v1639
        %v1704 = vmul.f32 %v1512, %v1640
        %v1705 = vmul.f32 %v1513, %v1641
        %v1706 = vmul.f32 %v1514, %v1642
        %v1707 = vmul.f32 %v1515, %v1643
        %v1708 = vmul.f32 %v1516, %v1644
        %v1709 = vmul.f32 %v1517, %v1645
        %v1710 = vmul.f32 %v1518, %v1646
        %v1711 = vmul.f32 %v1519, %v1647
        %v1712 = vmul.f32 %v1520, %v1648
        %v1713 = vmul.f32 %v1521, %v1649
        %v1714 = vmul.f32 %v1522, %v1650
        %v1715 = vmul.f32 %v1523, %v1651
        %v1716 = vmul.f32 %v1524, %v1652
        %v1717 = vmul.f32 %v1525, %v1653
        %v1718 = vmul.f32 %v1526, %v1654
        %v1719 = vmul.f32 %v1527, %v1655
        %v1720 = vmul.f32 %v1528, %v1656
        %v1721 = vmul.f32 %v1529, %v1657
        %v1722 = vmul.f32 %v1530, %v1658
        %v1723 = vmul.f32 %v1531, %v1659
        %v1724 = vmul.f32 %v1532, %v1660
        %v1725 = vmul.f32 %v1533, %v1661
        %v1726 = vmul.f32 %v1534, %v1662
        %v1727 = vmul.f32 %v1535, %v1663
        %v1728 = vmul.f32 %v1536, %v1664
        %v1729 = vld [vmem:[%s237] sm:$0xff]
        %v1730 = vadd.f32 %v1665, %v1666
        %v1731 = vadd.f32 %v1730, %v1667
        %v1732 = vadd.f32 %v1731, %v1668
        %v1733 = vadd.f32 %v1732, %v1669
        %v1734 = vadd.f32 %v1733, %v1670
        %v1735 = vadd.f32 %v1734, %v1671
        %v1736 = vadd.f32 %v1735, %v1672
        %v1737 = vadd.f32 %v1736, %v1673
        %v1738 = vadd.f32 %v1737, %v1674
        %v1739 = vadd.f32 %v1738, %v1675
        %v1740 = vadd.f32 %v1739, %v1676
        %v1741 = vadd.f32 %v1740, %v1677
        %v1742 = vadd.f32 %v1741, %v1678
        %v1743 = vadd.f32 %v1742, %v1679
        %v1744 = vadd.f32 %v1743, %v1680
        %v1745 = vadd.f32 %v1744, %v1681
        %v1746 = vadd.f32 %v1745, %v1682
        %v1747 = vadd.f32 %v1746, %v1683
        %v1748 = vadd.f32 %v1747, %v1684
        %v1749 = vadd.f32 %v1748, %v1685
        %v1750 = vadd.f32 %v1749, %v1686
        %v1751 = vadd.f32 %v1750, %v1687
        %v1752 = vadd.f32 %v1751, %v1688
        %v1753 = vadd.f32 %v1752, %v1689
        %v1754 = vadd.f32 %v1753, %v1690
        %v1755 = vadd.f32 %v1754, %v1691
        %v1756 = vadd.f32 %v1755, %v1692
        %v1757 = vadd.f32 %v1756, %v1693
        %v1758 = vadd.f32 %v1757, %v1694
        %v1759 = vadd.f32 %v1758, %v1695
        %v1760 = vadd.f32 %v1759, %v1696
        %v1761 = vadd.f32 %v1760, %v1697
        %v1762 = vadd.f32 %v1761, %v1698
        %v1763 = vadd.f32 %v1762, %v1699
        %v1764 = vadd.f32 %v1763, %v1700
        %v1765 = vadd.f32 %v1764, %v1701
        %v1766 = vadd.f32 %v1765, %v1702
        %v1767 = vadd.f32 %v1766, %v1703
        %v1768 = vadd.f32 %v1767, %v1704
        %v1769 = vadd.f32 %v1768, %v1705
        %v1770 = vadd.f32 %v1769, %v1706
        %v1771 = vadd.f32 %v1770, %v1707
        %v1772 = vadd.f32 %v1771, %v1708
        %v1773 = vadd.f32 %v1772, %v1709
        %v1774 = vadd.f32 %v1773, %v1710
        %v1775 = vadd.f32 %v1774, %v1711
        %v1776 = vadd.f32 %v1775, %v1712
        %v1777 = vadd.f32 %v1776, %v1713
        %v1778 = vadd.f32 %v1777, %v1714
        %v1779 = vadd.f32 %v1778, %v1715
        %v1780 = vadd.f32 %v1779, %v1716
        %v1781 = vadd.f32 %v1780, %v1717
        %v1782 = vadd.f32 %v1781, %v1718
        %v1783 = vadd.f32 %v1782, %v1719
        %v1784 = vadd.f32 %v1783, %v1720
        %v1785 = vadd.f32 %v1784, %v1721
        %v1786 = vadd.f32 %v1785, %v1722
        %v1787 = vadd.f32 %v1786, %v1723
        %v1788 = vadd.f32 %v1787, %v1724
        %v1789 = vadd.f32 %v1788, %v1725
        %v1790 = vadd.f32 %v1789, %v1726
        %v1791 = vadd.f32 %v1790, %v1727
        %v1792 = vadd.f32 %v1791, %v1728
        %v1793 = vadd.f32 %v1729, %v1792
        %1794 = vst [vmem:[%s237] sm:$0xff] %v1793
        %v1795 = vld [vmem:[%s203 + $0x600] sm:$0xff]
        %v1796 = vld [vmem:[%s203 + $0x608] sm:$0xff]
        %v1797 = vld [vmem:[%s203 + $0x610] sm:$0xff]
        %v1798 = vld [vmem:[%s203 + $0x618] sm:$0xff]
        %v1799 = vld [vmem:[%s203 + $0x620] sm:$0xff]
        %v1800 = vld [vmem:[%s203 + $0x628] sm:$0xff]
        %v1801 = vld [vmem:[%s203 + $0x630] sm:$0xff]
        %v1802 = vld [vmem:[%s203 + $0x638] sm:$0xff]
        %v1803 = vld [vmem:[%s203 + $0x640] sm:$0xff]
        %v1804 = vld [vmem:[%s203 + $0x648] sm:$0xff]
        %v1805 = vld [vmem:[%s203 + $0x650] sm:$0xff]
        %v1806 = vld [vmem:[%s203 + $0x658] sm:$0xff]
        %v1807 = vld [vmem:[%s203 + $0x660] sm:$0xff]
        %v1808 = vld [vmem:[%s203 + $0x668] sm:$0xff]
        %v1809 = vld [vmem:[%s203 + $0x670] sm:$0xff]
        %v1810 = vld [vmem:[%s203 + $0x678] sm:$0xff]
        %v1811 = vld [vmem:[%s203 + $0x680] sm:$0xff]
        %v1812 = vld [vmem:[%s203 + $0x688] sm:$0xff]
        %v1813 = vld [vmem:[%s203 + $0x690] sm:$0xff]
        %v1814 = vld [vmem:[%s203 + $0x698] sm:$0xff]
        %v1815 = vld [vmem:[%s203 + $0x6a0] sm:$0xff]
        %v1816 = vld [vmem:[%s203 + $0x6a8] sm:$0xff]
        %v1817 = vld [vmem:[%s203 + $0x6b0] sm:$0xff]
        %v1818 = vld [vmem:[%s203 + $0x6b8] sm:$0xff]
        %v1819 = vld [vmem:[%s203 + $0x6c0] sm:$0xff]
        %v1820 = vld [vmem:[%s203 + $0x6c8] sm:$0xff]
        %v1821 = vld [vmem:[%s203 + $0x6d0] sm:$0xff]
        %v1822 = vld [vmem:[%s203 + $0x6d8] sm:$0xff]
        %v1823 = vld [vmem:[%s203 + $0x6e0] sm:$0xff]
        %v1824 = vld [vmem:[%s203 + $0x6e8] sm:$0xff]
        %v1825 = vld [vmem:[%s203 + $0x6f0] sm:$0xff]
        %v1826 = vld [vmem:[%s203 + $0x6f8] sm:$0xff]
        %v1827 = vld [vmem:[%s203 + $0x700] sm:$0xff]
        %v1828 = vld [vmem:[%s203 + $0x708] sm:$0xff]
        %v1829 = vld [vmem:[%s203 + $0x710] sm:$0xff]
        %v1830 = vld [vmem:[%s203 + $0x718] sm:$0xff]
        %v1831 = vld [vmem:[%s203 + $0x720] sm:$0xff]
        %v1832 = vld [vmem:[%s203 + $0x728] sm:$0xff]
        %v1833 = vld [vmem:[%s203 + $0x730] sm:$0xff]
        %v1834 = vld [vmem:[%s203 + $0x738] sm:$0xff]
        %v1835 = vld [vmem:[%s203 + $0x740] sm:$0xff]
        %v1836 = vld [vmem:[%s203 + $0x748] sm:$0xff]
        %v1837 = vld [vmem:[%s203 + $0x750] sm:$0xff]
        %v1838 = vld [vmem:[%s203 + $0x758] sm:$0xff]
        %v1839 = vld [vmem:[%s203 + $0x760] sm:$0xff]
        %v1840 = vld [vmem:[%s203 + $0x768] sm:$0xff]
        %v1841 = vld [vmem:[%s203 + $0x770] sm:$0xff]
        %v1842 = vld [vmem:[%s203 + $0x778] sm:$0xff]
        %v1843 = vld [vmem:[%s203 + $0x780] sm:$0xff]
        %v1844 = vld [vmem:[%s203 + $0x788] sm:$0xff]
        %v1845 = vld [vmem:[%s203 + $0x790] sm:$0xff]
        %v1846 = vld [vmem:[%s203 + $0x798] sm:$0xff]
        %v1847 = vld [vmem:[%s203 + $0x7a0] sm:$0xff]
        %v1848 = vld [vmem:[%s203 + $0x7a8] sm:$0xff]
        %v1849 = vld [vmem:[%s203 + $0x7b0] sm:$0xff]
        %v1850 = vld [vmem:[%s203 + $0x7b8] sm:$0xff]
        %v1851 = vld [vmem:[%s203 + $0x7c0] sm:$0xff]
        %v1852 = vld [vmem:[%s203 + $0x7c8] sm:$0xff]
        %v1853 = vld [vmem:[%s203 + $0x7d0] sm:$0xff]
        %v1854 = vld [vmem:[%s203 + $0x7d8] sm:$0xff]
        %v1855 = vld [vmem:[%s203 + $0x7e0] sm:$0xff]
        %v1856 = vld [vmem:[%s203 + $0x7e8] sm:$0xff]
        %v1857 = vld [vmem:[%s203 + $0x7f0] sm:$0xff]
        %v1858 = vld [vmem:[%s203 + $0x7f8] sm:$0xff]
        %v1859 = vld [vmem:[%s212 + $0x600] sm:$0xff]
        %v1860 = vld [vmem:[%s212 + $0x608] sm:$0xff]
        %v1861 = vld [vmem:[%s212 + $0x610] sm:$0xff]
        %v1862 = vld [vmem:[%s212 + $0x618] sm:$0xff]
        %v1863 = vld [vmem:[%s212 + $0x620] sm:$0xff]
        %v1864 = vld [vmem:[%s212 + $0x628] sm:$0xff]
        %v1865 = vld [vmem:[%s212 + $0x630] sm:$0xff]
        %v1866 = vld [vmem:[%s212 + $0x638] sm:$0xff]
        %v1867 = vld [vmem:[%s212 + $0x640] sm:$0xff]
        %v1868 = vld [vmem:[%s212 + $0x648] sm:$0xff]
        %v1869 = vld [vmem:[%s212 + $0x650] sm:$0xff]
        %v1870 = vld [vmem:[%s212 + $0x658] sm:$0xff]
        %v1871 = vld [vmem:[%s212 + $0x660] sm:$0xff]
        %v1872 = vld [vmem:[%s212 + $0x668] sm:$0xff]
        %v1873 = vld [vmem:[%s212 + $0x670] sm:$0xff]
        %v1874 = vld [vmem:[%s212 + $0x678] sm:$0xff]
        %v1875 = vld [vmem:[%s212 + $0x680] sm:$0xff]
        %v1876 = vld [vmem:[%s212 + $0x688] sm:$0xff]
        %v1877 = vld [vmem:[%s212 + $0x690] sm:$0xff]
        %v1878 = vld [vmem:[%s212 + $0x698] sm:$0xff]
        %v1879 = vld [vmem:[%s212 + $0x6a0] sm:$0xff]
        %v1880 = vld [vmem:[%s212 + $0x6a8] sm:$0xff]
        %v1881 = vld [vmem:[%s212 + $0x6b0] sm:$0xff]
        %v1882 = vld [vmem:[%s212 + $0x6b8] sm:$0xff]
        %v1883 = vld [vmem:[%s212 + $0x6c0] sm:$0xff]
        %v1884 = vld [vmem:[%s212 + $0x6c8] sm:$0xff]
        %v1885 = vld [vmem:[%s212 + $0x6d0] sm:$0xff]
        %v1886 = vld [vmem:[%s212 + $0x6d8] sm:$0xff]
        %v1887 = vld [vmem:[%s212 + $0x6e0] sm:$0xff]
        %v1888 = vld [vmem:[%s212 + $0x6e8] sm:$0xff]
        %v1889 = vld [vmem:[%s212 + $0x6f0] sm:$0xff]
        %v1890 = vld [vmem:[%s212 + $0x6f8] sm:$0xff]
        %v1891 = vld [vmem:[%s212 + $0x700] sm:$0xff]
        %v1892 = vld [vmem:[%s212 + $0x708] sm:$0xff]
        %v1893 = vld [vmem:[%s212 + $0x710] sm:$0xff]
        %v1894 = vld [vmem:[%s212 + $0x718] sm:$0xff]
        %v1895 = vld [vmem:[%s212 + $0x720] sm:$0xff]
        %v1896 = vld [vmem:[%s212 + $0x728] sm:$0xff]
        %v1897 = vld [vmem:[%s212 + $0x730] sm:$0xff]
        %v1898 = vld [vmem:[%s212 + $0x738] sm:$0xff]
        %v1899 = vld [vmem:[%s212 + $0x740] sm:$0xff]
        %v1900 = vld [vmem:[%s212 + $0x748] sm:$0xff]
        %v1901 = vld [vmem:[%s212 + $0x750] sm:$0xff]
        %v1902 = vld [vmem:[%s212 + $0x758] sm:$0xff]
        %v1903 = vld [vmem:[%s212 + $0x760] sm:$0xff]
        %v1904 = vld [vmem:[%s212 + $0x768] sm:$0xff]
        %v1905 = vld [vmem:[%s212 + $0x770] sm:$0xff]
        %v1906 = vld [vmem:[%s212 + $0x778] sm:$0xff]
        %v1907 = vld [vmem:[%s212 + $0x780] sm:$0xff]
        %v1908 = vld [vmem:[%s212 + $0x788] sm:$0xff]
        %v1909 = vld [vmem:[%s212 + $0x790] sm:$0xff]
        %v1910 = vld [vmem:[%s212 + $0x798] sm:$0xff]
        %v1911 = vld [vmem:[%s212 + $0x7a0] sm:$0xff]
        %v1912 = vld [vmem:[%s212 + $0x7a8] sm:$0xff]
        %v1913 = vld [vmem:[%s212 + $0x7b0] sm:$0xff]
        %v1914 = vld [vmem:[%s212 + $0x7b8] sm:$0xff]
        %v1915 = vld [vmem:[%s212 + $0x7c0] sm:$0xff]
        %v1916 = vld [vmem:[%s212 + $0x7c8] sm:$0xff]
        %v1917 = vld [vmem:[%s212 + $0x7d0] sm:$0xff]
        %v1918 = vld [vmem:[%s212 + $0x7d8] sm:$0xff]
        %v1919 = vld [vmem:[%s212 + $0x7e0] sm:$0xff]
        %v1920 = vld [vmem:[%s212 + $0x7e8] sm:$0xff]
        %v1921 = vld [vmem:[%s212 + $0x7f0] sm:$0xff]
        %v1922 = vld [vmem:[%s212 + $0x7f8] sm:$0xff]
        %v1923 = vsub.f32 %v1859, %v1795
        %v1924 = vsub.f32 %v1860, %v1796
        %v1925 = vsub.f32 %v1861, %v1797
        %v1926 = vsub.f32 %v1862, %v1798
        %v1927 = vsub.f32 %v1863, %v1799
        %v1928 = vsub.f32 %v1864, %v1800
        %v1929 = vsub.f32 %v1865, %v1801
        %v1930 = vsub.f32 %v1866, %v1802
        %v1931 = vsub.f32 %v1867, %v1803
        %v1932 = vsub.f32 %v1868, %v1804
        %v1933 = vsub.f32 %v1869, %v1805
        %v1934 = vsub.f32 %v1870, %v1806
        %v1935 = vsub.f32 %v1871, %v1807
        %v1936 = vsub.f32 %v1872, %v1808
        %v1937 = vsub.f32 %v1873, %v1809
        %v1938 = vsub.f32 %v1874, %v1810
        %v1939 = vsub.f32 %v1875, %v1811
        %v1940 = vsub.f32 %v1876, %v1812
        %v1941 = vsub.f32 %v1877, %v1813
        %v1942 = vsub.f32 %v1878, %v1814
        %v1943 = vsub.f32 %v1879, %v1815
        %v1944 = vsub.f32 %v1880, %v1816
        %v1945 = vsub.f32 %v1881, %v1817
        %v1946 = vsub.f32 %v1882, %v1818
        %v1947 = vsub.f32 %v1883, %v1819
        %v1948 = vsub.f32 %v1884, %v1820
        %v1949 = vsub.f32 %v1885, %v1821
        %v1950 = vsub.f32 %v1886, %v1822
        %v1951 = vsub.f32 %v1887, %v1823
        %v1952 = vsub.f32 %v1888, %v1824
        %v1953 = vsub.f32 %v1889, %v1825
        %v1954 = vsub.f32 %v1890, %v1826
        %v1955 = vsub.f32 %v1891, %v1827
        %v1956 = vsub.f32 %v1892, %v1828
        %v1957 = vsub.f32 %v1893, %v1829
        %v1958 = vsub.f32 %v1894, %v1830
        %v1959 = vsub.f32 %v1895, %v1831
        %v1960 = vsub.f32 %v1896, %v1832
        %v1961 = vsub.f32 %v1897, %v1833
        %v1962 = vsub.f32 %v1898, %v1834
        %v1963 = vsub.f32 %v1899, %v1835
        %v1964 = vsub.f32 %v1900, %v1836
        %v1965 = vsub.f32 %v1901, %v1837
        %v1966 = vsub.f32 %v1902, %v1838
        %v1967 = vsub.f32 %v1903, %v1839
        %v1968 = vsub.f32 %v1904, %v1840
        %v1969 = vsub.f32 %v1905, %v1841
        %v1970 = vsub.f32 %v1906, %v1842
        %v1971 = vsub.f32 %v1907, %v1843
        %v1972 = vsub.f32 %v1908, %v1844
        %v1973 = vsub.f32 %v1909, %v1845
        %v1974 = vsub.f32 %v1910, %v1846
        %v1975 = vsub.f32 %v1911, %v1847
        %v1976 = vsub.f32 %v1912, %v1848
        %v1977 = vsub.f32 %v1913, %v1849
        %v1978 = vsub.f32 %v1914, %v1850
        %v1979 = vsub.f32 %v1915, %v1851
        %v1980 = vsub.f32 %v1916, %v1852
        %v1981 = vsub.f32 %v1917, %v1853
        %v1982 = vsub.f32 %v1918, %v1854
        %v1983 = vsub.f32 %v1919, %v1855
        %v1984 = vsub.f32 %v1920, %v1856
        %v1985 = vsub.f32 %v1921, %v1857
        %v1986 = vsub.f32 %v1922, %v1858
        %v1987 = vmul.f32 %v1923, %v1923
        %v1988 = vmul.f32 %v1924, %v1924
        %v1989 = vmul.f32 %v1925, %v1925
        %v1990 = vmul.f32 %v1926, %v1926
        %v1991 = vmul.f32 %v1927, %v1927
        %v1992 = vmul.f32 %v1928, %v1928
        %v1993 = vmul.f32 %v1929, %v1929
        %v1994 = vmul.f32 %v1930, %v1930
        %v1995 = vmul.f32 %v1931, %v1931
        %v1996 = vmul.f32 %v1932, %v1932
        %v1997 = vmul.f32 %v1933, %v1933
        %v1998 = vmul.f32 %v1934, %v1934
        %v1999 = vmul.f32 %v1935, %v1935
        %v2000 = vmul.f32 %v1936, %v1936
        %v2001 = vmul.f32 %v1937, %v1937
        %v2002 = vmul.f32 %v1938, %v1938
        %v2003 = vmul.f32 %v1939, %v1939
        %v2004 = vmul.f32 %v1940, %v1940
        %v2005 = vmul.f32 %v1941, %v1941
        %v2006 = vmul.f32 %v1942, %v1942
        %v2007 = vmul.f32 %v1943, %v1943
        %v2008 = vmul.f32 %v1944, %v1944
        %v2009 = vmul.f32 %v1945, %v1945
        %v2010 = vmul.f32 %v1946, %v1946
        %v2011 = vmul.f32 %v1947, %v1947
        %v2012 = vmul.f32 %v1948, %v1948
        %v2013 = vmul.f32 %v1949, %v1949
        %v2014 = vmul.f32 %v1950, %v1950
        %v2015 = vmul.f32 %v1951, %v1951
        %v2016 = vmul.f32 %v1952, %v1952
        %v2017 = vmul.f32 %v1953, %v1953
        %v2018 = vmul.f32 %v1954, %v1954
        %v2019 = vmul.f32 %v1955, %v1955
        %v2020 = vmul.f32 %v1956, %v1956
        %v2021 = vmul.f32 %v1957, %v1957
        %v2022 = vmul.f32 %v1958, %v1958
        %v2023 = vmul.f32 %v1959, %v1959
        %v2024 = vmul.f32 %v1960, %v1960
        %v2025 = vmul.f32 %v1961, %v1961
        %v2026 = vmul.f32 %v1962, %v1962
        %v2027 = vmul.f32 %v1963, %v1963
        %v2028 = vmul.f32 %v1964, %v1964
        %v2029 = vmul.f32 %v1965, %v1965
        %v2030 = vmul.f32 %v1966, %v1966
        %v2031 = vmul.f32 %v1967, %v1967
        %v2032 = vmul.f32 %v1968, %v1968
        %v2033 = vmul.f32 %v1969, %v1969
        %v2034 = vmul.f32 %v1970, %v1970
        %v2035 = vmul.f32 %v1971, %v1971
        %v2036 = vmul.f32 %v1972, %v1972
        %v2037 = vmul.f32 %v1973, %v1973
        %v2038 = vmul.f32 %v1974, %v1974
        %v2039 = vmul.f32 %v1975, %v1975
        %v2040 = vmul.f32 %v1976, %v1976
        %v2041 = vmul.f32 %v1977, %v1977
        %v2042 = vmul.f32 %v1978, %v1978
        %v2043 = vmul.f32 %v1979, %v1979
        %v2044 = vmul.f32 %v1980, %v1980
        %v2045 = vmul.f32 %v1981, %v1981
        %v2046 = vmul.f32 %v1982, %v1982
        %v2047 = vmul.f32 %v1983, %v1983
        %v2048 = vmul.f32 %v1984, %v1984
        %v2049 = vmul.f32 %v1985, %v1985
        %v2050 = vmul.f32 %v1986, %v1986
        %v2051 = vtanh.pop %v1859
        %v2052 = vtanh.pop %v1860
        %v2053 = vtanh.pop %v1861
        %v2054 = vtanh.pop %v1862
        %v2055 = vtanh.pop %v1863
        %v2056 = vtanh.pop %v1864
        %v2057 = vtanh.pop %v1865
        %v2058 = vtanh.pop %v1866
        %v2059 = vtanh.pop %v1867
        %v2060 = vtanh.pop %v1868
        %v2061 = vtanh.pop %v1869
        %v2062 = vtanh.pop %v1870
        %v2063 = vtanh.pop %v1871
        %v2064 = vtanh.pop %v1872
        %v2065 = vtanh.pop %v1873
        %v2066 = vtanh.pop %v1874
        %v2067 = vtanh.pop %v1875
        %v2068 = vtanh.pop %v1876
        %v2069 = vtanh.pop %v1877
        %v2070 = vtanh.pop %v1878
        %v2071 = vtanh.pop %v1879
        %v2072 = vtanh.pop %v1880
        %v2073 = vtanh.pop %v1881
        %v2074 = vtanh.pop %v1882
        %v2075 = vtanh.pop %v1883
        %v2076 = vtanh.pop %v1884
        %v2077 = vtanh.pop %v1885
        %v2078 = vtanh.pop %v1886
        %v2079 = vtanh.pop %v1887
        %v2080 = vtanh.pop %v1888
        %v2081 = vtanh.pop %v1889
        %v2082 = vtanh.pop %v1890
        %v2083 = vtanh.pop %v1891
        %v2084 = vtanh.pop %v1892
        %v2085 = vtanh.pop %v1893
        %v2086 = vtanh.pop %v1894
        %v2087 = vtanh.pop %v1895
        %v2088 = vtanh.pop %v1896
        %v2089 = vtanh.pop %v1897
        %v2090 = vtanh.pop %v1898
        %v2091 = vtanh.pop %v1899
        %v2092 = vtanh.pop %v1900
        %v2093 = vtanh.pop %v1901
        %v2094 = vtanh.pop %v1902
        %v2095 = vtanh.pop %v1903
        %v2096 = vtanh.pop %v1904
        %v2097 = vtanh.pop %v1905
        %v2098 = vtanh.pop %v1906
        %v2099 = vtanh.pop %v1907
        %v2100 = vtanh.pop %v1908
        %v2101 = vtanh.pop %v1909
        %v2102 = vtanh.pop %v1910
        %v2103 = vtanh.pop %v1911
        %v2104 = vtanh.pop %v1912
        %v2105 = vtanh.pop %v1913
        %v2106 = vtanh.pop %v1914
        %v2107 = vtanh.pop %v1915
        %v2108 = vtanh.pop %v1916
        %v2109 = vtanh.pop %v1917
        %v2110 = vtanh.pop %v1918
        %v2111 = vtanh.pop %v1919
        %v2112 = vtanh.pop %v1920
        %v2113 = vtanh.pop %v1921
        %v2114 = vtanh.pop %v1922
        %v2115 = vadd.f32 %v2051, 0.05
        %v2116 = vadd.f32 %v2052, 0.05
        %v2117 = vadd.f32 %v2053, 0.05
        %v2118 = vadd.f32 %v2054, 0.05
        %v2119 = vadd.f32 %v2055, 0.05
        %v2120 = vadd.f32 %v2056, 0.05
        %v2121 = vadd.f32 %v2057, 0.05
        %v2122 = vadd.f32 %v2058, 0.05
        %v2123 = vadd.f32 %v2059, 0.05
        %v2124 = vadd.f32 %v2060, 0.05
        %v2125 = vadd.f32 %v2061, 0.05
        %v2126 = vadd.f32 %v2062, 0.05
        %v2127 = vadd.f32 %v2063, 0.05
        %v2128 = vadd.f32 %v2064, 0.05
        %v2129 = vadd.f32 %v2065, 0.05
        %v2130 = vadd.f32 %v2066, 0.05
        %v2131 = vadd.f32 %v2067, 0.05
        %v2132 = vadd.f32 %v2068, 0.05
        %v2133 = vadd.f32 %v2069, 0.05
        %v2134 = vadd.f32 %v2070, 0.05
        %v2135 = vadd.f32 %v2071, 0.05
        %v2136 = vadd.f32 %v2072, 0.05
        %v2137 = vadd.f32 %v2073, 0.05
        %v2138 = vadd.f32 %v2074, 0.05
        %v2139 = vadd.f32 %v2075, 0.05
        %v2140 = vadd.f32 %v2076, 0.05
        %v2141 = vadd.f32 %v2077, 0.05
        %v2142 = vadd.f32 %v2078, 0.05
        %v2143 = vadd.f32 %v2079, 0.05
        %v2144 = vadd.f32 %v2080, 0.05
        %v2145 = vadd.f32 %v2081, 0.05
        %v2146 = vadd.f32 %v2082, 0.05
        %v2147 = vadd.f32 %v2083, 0.05
        %v2148 = vadd.f32 %v2084, 0.05
        %v2149 = vadd.f32 %v2085, 0.05
        %v2150 = vadd.f32 %v2086, 0.05
        %v2151 = vadd.f32 %v2087, 0.05
        %v2152 = vadd.f32 %v2088, 0.05
        %v2153 = vadd.f32 %v2089, 0.05
        %v2154 = vadd.f32 %v2090, 0.05
        %v2155 = vadd.f32 %v2091, 0.05
        %v2156 = vadd.f32 %v2092, 0.05
        %v2157 = vadd.f32 %v2093, 0.05
        %v2158 = vadd.f32 %v2094, 0.05
        %v2159 = vadd.f32 %v2095, 0.05
        %v2160 = vadd.f32 %v2096, 0.05
        %v2161 = vadd.f32 %v2097, 0.05
        %v2162 = vadd.f32 %v2098, 0.05
        %v2163 = vadd.f32 %v2099, 0.05
        %v2164 = vadd.f32 %v2100, 0.05
        %v2165 = vadd.f32 %v2101, 0.05
        %v2166 = vadd.f32 %v2102, 0.05
        %v2167 = vadd.f32 %v2103, 0.05
        %v2168 = vadd.f32 %v2104, 0.05
        %v2169 = vadd.f32 %v2105, 0.05
        %v2170 = vadd.f32 %v2106, 0.05
        %v2171 = vadd.f32 %v2107, 0.05
        %v2172 = vadd.f32 %v2108, 0.05
        %v2173 = vadd.f32 %v2109, 0.05
        %v2174 = vadd.f32 %v2110, 0.05
        %v2175 = vadd.f32 %v2111, 0.05
        %v2176 = vadd.f32 %v2112, 0.05
        %v2177 = vadd.f32 %v2113, 0.05
        %v2178 = vadd.f32 %v2114, 0.05
        %v2179 = vmul.f32 %v1987, %v2115
        %v2180 = vmul.f32 %v1988, %v2116
        %v2181 = vmul.f32 %v1989, %v2117
        %v2182 = vmul.f32 %v1990, %v2118
        %v2183 = vmul.f32 %v1991, %v2119
        %v2184 = vmul.f32 %v1992, %v2120
        %v2185 = vmul.f32 %v1993, %v2121
        %v2186 = vmul.f32 %v1994, %v2122
        %v2187 = vmul.f32 %v1995, %v2123
        %v2188 = vmul.f32 %v1996, %v2124
        %v2189 = vmul.f32 %v1997, %v2125
        %v2190 = vmul.f32 %v1998, %v2126
        %v2191 = vmul.f32 %v1999, %v2127
        %v2192 = vmul.f32 %v2000, %v2128
        %v2193 = vmul.f32 %v2001, %v2129
        %v2194 = vmul.f32 %v2002, %v2130
        %v2195 = vmul.f32 %v2003, %v2131
        %v2196 = vmul.f32 %v2004, %v2132
        %v2197 = vmul.f32 %v2005, %v2133
        %v2198 = vmul.f32 %v2006, %v2134
        %v2199 = vmul.f32 %v2007, %v2135
        %v2200 = vmul.f32 %v2008, %v2136
        %v2201 = vmul.f32 %v2009, %v2137
        %v2202 = vmul.f32 %v2010, %v2138
        %v2203 = vmul.f32 %v2011, %v2139
        %v2204 = vmul.f32 %v2012, %v2140
        %v2205 = vmul.f32 %v2013, %v2141
        %v2206 = vmul.f32 %v2014, %v2142
        %v2207 = vmul.f32 %v2015, %v2143
        %v2208 = vmul.f32 %v2016, %v2144
        %v2209 = vmul.f32 %v2017, %v2145
        %v2210 = vmul.f32 %v2018, %v2146
        %v2211 = vmul.f32 %v2019, %v2147
        %v2212 = vmul.f32 %v2020, %v2148
        %v2213 = vmul.f32 %v2021, %v2149
        %v2214 = vmul.f32 %v2022, %v2150
        %v2215 = vmul.f32 %v2023, %v2151
        %v2216 = vmul.f32 %v2024, %v2152
        %v2217 = vmul.f32 %v2025, %v2153
        %v2218 = vmul.f32 %v2026, %v2154
        %v2219 = vmul.f32 %v2027, %v2155
        %v2220 = vmul.f32 %v2028, %v2156
        %v2221 = vmul.f32 %v2029, %v2157
        %v2222 = vmul.f32 %v2030, %v2158
        %v2223 = vmul.f32 %v2031, %v2159
        %v2224 = vmul.f32 %v2032, %v2160
        %v2225 = vmul.f32 %v2033, %v2161
        %v2226 = vmul.f32 %v2034, %v2162
        %v2227 = vmul.f32 %v2035, %v2163
        %v2228 = vmul.f32 %v2036, %v2164
        %v2229 = vmul.f32 %v2037, %v2165
        %v2230 = vmul.f32 %v2038, %v2166
        %v2231 = vmul.f32 %v2039, %v2167
        %v2232 = vmul.f32 %v2040, %v2168
        %v2233 = vmul.f32 %v2041, %v2169
        %v2234 = vmul.f32 %v2042, %v2170
        %v2235 = vmul.f32 %v2043, %v2171
        %v2236 = vmul.f32 %v2044, %v2172
        %v2237 = vmul.f32 %v2045, %v2173
        %v2238 = vmul.f32 %v2046, %v2174
        %v2239 = vmul.f32 %v2047, %v2175
        %v2240 = vmul.f32 %v2048, %v2176
        %v2241 = vmul.f32 %v2049, %v2177
        %v2242 = vmul.f32 %v2050, %v2178
        %v2243 = vld [vmem:[%s237] sm:$0xff]
        %v2244 = vadd.f32 %v2179, %v2180
        %v2245 = vadd.f32 %v2244, %v2181
        %v2246 = vadd.f32 %v2245, %v2182
        %v2247 = vadd.f32 %v2246, %v2183
        %v2248 = vadd.f32 %v2247, %v2184
        %v2249 = vadd.f32 %v2248, %v2185
        %v2250 = vadd.f32 %v2249, %v2186
        %v2251 = vadd.f32 %v2250, %v2187
        %v2252 = vadd.f32 %v2251, %v2188
        %v2253 = vadd.f32 %v2252, %v2189
        %v2254 = vadd.f32 %v2253, %v2190
        %v2255 = vadd.f32 %v2254, %v2191
        %v2256 = vadd.f32 %v2255, %v2192
        %v2257 = vadd.f32 %v2256, %v2193
        %v2258 = vadd.f32 %v2257, %v2194
        %v2259 = vadd.f32 %v2258, %v2195
        %v2260 = vadd.f32 %v2259, %v2196
        %v2261 = vadd.f32 %v2260, %v2197
        %v2262 = vadd.f32 %v2261, %v2198
        %v2263 = vadd.f32 %v2262, %v2199
        %v2264 = vadd.f32 %v2263, %v2200
        %v2265 = vadd.f32 %v2264, %v2201
        %v2266 = vadd.f32 %v2265, %v2202
        %v2267 = vadd.f32 %v2266, %v2203
        %v2268 = vadd.f32 %v2267, %v2204
        %v2269 = vadd.f32 %v2268, %v2205
        %v2270 = vadd.f32 %v2269, %v2206
        %v2271 = vadd.f32 %v2270, %v2207
        %v2272 = vadd.f32 %v2271, %v2208
        %v2273 = vadd.f32 %v2272, %v2209
        %v2274 = vadd.f32 %v2273, %v2210
        %v2275 = vadd.f32 %v2274, %v2211
        %v2276 = vadd.f32 %v2275, %v2212
        %v2277 = vadd.f32 %v2276, %v2213
        %v2278 = vadd.f32 %v2277, %v2214
        %v2279 = vadd.f32 %v2278, %v2215
        %v2280 = vadd.f32 %v2279, %v2216
        %v2281 = vadd.f32 %v2280, %v2217
        %v2282 = vadd.f32 %v2281, %v2218
        %v2283 = vadd.f32 %v2282, %v2219
        %v2284 = vadd.f32 %v2283, %v2220
        %v2285 = vadd.f32 %v2284, %v2221
        %v2286 = vadd.f32 %v2285, %v2222
        %v2287 = vadd.f32 %v2286, %v2223
        %v2288 = vadd.f32 %v2287, %v2224
        %v2289 = vadd.f32 %v2288, %v2225
        %v2290 = vadd.f32 %v2289, %v2226
        %v2291 = vadd.f32 %v2290, %v2227
        %v2292 = vadd.f32 %v2291, %v2228
        %v2293 = vadd.f32 %v2292, %v2229
        %v2294 = vadd.f32 %v2293, %v2230
        %v2295 = vadd.f32 %v2294, %v2231
        %v2296 = vadd.f32 %v2295, %v2232
        %v2297 = vadd.f32 %v2296, %v2233
        %v2298 = vadd.f32 %v2297, %v2234
        %v2299 = vadd.f32 %v2298, %v2235
        %v2300 = vadd.f32 %v2299, %v2236
        %v2301 = vadd.f32 %v2300, %v2237
        %v2302 = vadd.f32 %v2301, %v2238
        %v2303 = vadd.f32 %v2302, %v2239
        %v2304 = vadd.f32 %v2303, %v2240
        %v2305 = vadd.f32 %v2304, %v2241
        %v2306 = vadd.f32 %v2305, %v2242
        %v2307 = vadd.f32 %v2243, %v2306
        %2308 = vst [vmem:[%s237] sm:$0xff] %v2307
        %s2309 = sand.u32 %s110, 1
        %s2310 = scalar_lea.sflag [#allocation4], %s2309
        %s2311 = sand.u32 %s110, 1
        %s2312 = smul.addr %s2311, 8
        %s2313 = scalar_lea.vmem [#allocation7], %s2312
        // Predicated region
        $region41: #{tpu_custom_call.1} parent=27 // pred_check
          %p2314 = pneg %p120
        $region42: #{tpu_custom_call.1} parent=27 // pred_check_branch
          %2316 = sbr.rel (%p2314) target = $region44
        $region43: #{tpu_custom_call.1} parent=27 // pred_region
          %s2318 = ssub.s32 128, 128
          %2319 = vsyncadd %s2310, %s2318
          %s2320 = smul.addr %s26, 128
          %s2321 = scalar_lea.hbm %s2, %s2320
          %s2323 = sshll.u32 %s2313, 4
          %s2324 = int_to_ptr.vmem [resolvable:$true] %s2323
          %2326 = dma.vmem_to_hbm [thread:$0]  %s2324, 128, %s2321, %s2310
        $region44: #{tpu_custom_call.1} parent=27 // pred_fallthru
          _
      $region28: #{tpu_custom_call.1} parent=5 // pred_fallthru
        _
      %p2327 = scmp.le.s32.totalorder 2, %s17
      // Predicated region
      $region45: #{tpu_custom_call.1} parent=5 // pred_check
        %p2328 = pneg %p2327
      $region46: #{tpu_custom_call.1} parent=5 // pred_check_branch
        %2330 = sbr.rel (%p2328) target = $region48
      $region47: #{tpu_custom_call.1} parent=5 // pred_region
        %s2331 = ssub.s32 %s17, 2
        // Predicated region
        $region49: #{tpu_custom_call.1} parent=47 // pred_check
          %p2332 = pneg %p126
        $region50: #{tpu_custom_call.1} parent=47 // pred_check_branch
          %2334 = sbr.rel (%p2332) target = $region52
        $region51: #{tpu_custom_call.1} parent=47 // pred_region
          %s2335 = sand.u32 %s111, 1
          %s2336 = scalar_lea.sflag [#allocation4], %s2335
          %s2337 = sand.u32 %s111, 1
          %s2338 = smul.addr %s2337, 8
          %s2339 = scalar_lea.vmem [#allocation7], %s2338
          %2340 = dma.done %s2336, 128
        $region52: #{tpu_custom_call.1} parent=47 // pred_fallthru
          _
      $region48: #{tpu_custom_call.1} parent=5 // pred_fallthru
        _
    $region6: #{tpu_custom_call.1} parent=1 // loop_footer
      %s21 = sadd.s32 1, %s17
    $region7: #{tpu_custom_call.1} parent=1 // loop_footer_branch
      %16 = sbr.rel target = $region3
    $region8: #{tpu_custom_call.1} parent=1 // loop_exit
      _
    %2341 = vsyncpa [#allocation3], 1
    %s2342 = scalar_lea.sflag [#allocation3], 1
    %2343 = vsyncpa %s2342, 1
    %2344 = vsyncpa [#allocation6], 1
    %s2345 = scalar_lea.sflag [#allocation6], 1
    %2346 = vsyncpa %s2345, 1
    %2347 = vsyncpa [#allocation4], 1
    %s2348 = scalar_lea.sflag [#allocation4], 1
    %2349 = vsyncpa %s2348, 1

</llo_original>
